<compile_context>
chip_gen: v7x
topology: tpu7x:2x2x1
jax: 0.10.0
libtpu: 0.0.40
codegen_flags: <defaults>
</compile_context>

<pallas_src>
import functools

import jax
import jax.numpy as jnp
from jax import lax
from jax.experimental import pallas as pl
from jax.experimental.pallas import tpu as pltpu

LANES = 128  # TPU lane width; packed parameter rows are 128 lanes wide.


def _round_up(x, m):
    return (x + m - 1) // m * m


def _leaky_relu(x, slope=0.01):
    return jnp.where(x > 0, x, slope * x)


def _ipow(v, p):
    """Integer power by repeated multiplication (lowering-safe inside Pallas)."""
    out = v
    for _ in range(p - 1):
        out = out * v
    return out


# ----------------------------------------------------------------------------
# Parameter packing: transposed weights + column biases in one (rows, 128) buffer.
# Every section starts on an 8-row (sublane-tile) boundary; biases live in lane 0.
# ----------------------------------------------------------------------------
def pack_params(params):
    w1, b1 = params["w1"], params["b1"]
    w2, b2 = params["w2"], params["b2"]
    w3, b3 = params["w3"], params["b3"]
    wo, bo = params["wo"], params["bo"]
    input_size, neuron = w1.shape
    output_size = wo.shape[1]
    assert input_size <= LANES and neuron <= LANES and output_size <= LANES

    ru = lambda n: _round_up(n, 8)
    r_w1 = 0
    r_w2 = r_w1 + ru(neuron)
    r_w3 = r_w2 + ru(neuron)
    r_wo = r_w3 + ru(neuron)
    r_b1 = r_wo + ru(output_size)
    r_b2 = r_b1 + ru(neuron)
    r_b3 = r_b2 + ru(neuron)
    r_bo = r_b3 + ru(neuron)
    rows = _round_up(r_bo + ru(output_size), 8)

    buf = jnp.zeros((rows, LANES), jnp.float32)
    buf = buf.at[r_w1:r_w1 + neuron, :input_size].set(w1.T)           # W1^T
    buf = buf.at[r_w2:r_w2 + neuron, :neuron].set(w2.T)               # W2^T
    buf = buf.at[r_w3:r_w3 + neuron, :neuron].set(w3.T)               # W3^T
    buf = buf.at[r_wo:r_wo + output_size, :neuron].set(wo.T)          # Wo^T (zero-padded rows)
    buf = buf.at[r_b1:r_b1 + neuron, 0].set(b1[0])                    # biases as columns, lane 0
    buf = buf.at[r_b2:r_b2 + neuron, 0].set(b2[0])
    buf = buf.at[r_b3:r_b3 + neuron, 0].set(b3[0])
    buf = buf.at[r_bo:r_bo + output_size, 0].set(bo[0])

    offs = dict(r_w1=r_w1, r_w2=r_w2, r_w3=r_w3, r_wo=r_wo,
                wo_rows=ru(output_size),
                r_b1=r_b1, r_b2=r_b2, r_b3=r_b3, r_bo=r_bo, rows=rows)
    return buf, offs


# ----------------------------------------------------------------------------
# Kernel: one batch (lane) tile per grid step; params are VMEM-resident across steps.
# All intermediates are (neuron, TILE_B): features on sublanes, batch on lanes.
# ----------------------------------------------------------------------------
def nbc_forward_kernel(xT_ref, p_ref, o_ref, *, input_size, neuron, output_size,
                       count, order, r_w1, r_w2, r_w3, r_wo, wo_rows,
                       r_b1, r_b2, r_b3, r_bo):
    hi = lax.Precision.HIGHEST
    xT = xT_ref[...]                                       # (input_size, TILE_B)

    # ---- fc1 + LeakyReLU ----
    b1 = p_ref[r_b1:r_b1 + neuron, 0:1]                    # (neuron, 1)
    if input_size <= 4:
        # K is tiny: VPU outer-product (broadcast FMAs), skip the MXU entirely.
        w1T = p_ref[r_w1:r_w1 + neuron, :input_size]       # (neuron, input_size)
        h = b1 + w1T[:, 0:1] * xT[0:1, :]
        for k in range(1, input_size):
            h = h + w1T[:, k:k + 1] * xT[k:k + 1, :]
    else:
        w1T = p_ref[r_w1:r_w1 + neuron, :input_size]
        h = jnp.dot(w1T, xT, preferred_element_type=jnp.float32, precision=hi) + b1
    h = _leaky_relu(h)                                      # (neuron, TILE_B)

    # ---- fc2 ----
    w2T = p_ref[r_w2:r_w2 + neuron, :neuron]
    b2 = p_ref[r_b2:r_b2 + neuron, 0:1]
    h = jnp.dot(w2T, h, preferred_element_type=jnp.float32, precision=hi) + b2

    # ---- PolyActivation: row group i (height `count`) raised to power (i+1) ----
    if count % 8 == 0:
        # Each group is a whole number of sublane tiles -> static slices are free.
        parts = [_ipow(h[(i - 1) * count:i * count, :], i) for i in range(1, order + 1)]
        h = jnp.concatenate(parts, axis=0)
    else:
        # Fallback: running powers + per-group range-compare masks (pure VPU).
        row = lax.broadcasted_iota(jnp.int32, h.shape, 0)
        acc = h
        poly = jnp.where(row < count, acc, jnp.zeros_like(acc))
        for i in range(2, order + 1):
            acc = acc * h
            in_grp = (row >= (i - 1) * count) & (row < i * count)
            poly = jnp.where(in_grp, acc, poly)
        h = poly

    # ---- fc3 + LeakyReLU ----
    w3T = p_ref[r_w3:r_w3 + neuron, :neuron]
    b3 = p_ref[r_b3:r_b3 + neuron, 0:1]
    h = _leaky_relu(jnp.dot(w3T, h, preferred_element_type=jnp.float32, precision=hi) + b3)

    # ---- fc_out: lane-dense (output_size, TILE_B) store ----
    woT = p_ref[r_wo:r_wo + wo_rows, :neuron]               # zero-padded extra rows
    bo = p_ref[r_bo:r_bo + output_size, 0:1]                # (output_size, 1)
    out = jnp.dot(woT, h, preferred_element_type=jnp.float32, precision=hi)
    out = out[:output_size, :] + bo
    o_ref[...] = out.astype(o_ref.dtype)


# ----------------------------------------------------------------------------
# Wrapper: transposed dataflow, large lane tiles, no wrapper-side padding.
# ----------------------------------------------------------------------------
def _choose_tile(B, tile_b):
    """Lane-dim tile: a multiple of 128 (or the full batch for small B)."""
    tile_b = max(LANES, (tile_b // LANES) * LANES)
    if B <= LANES:
        return B  # full-dim block is legal even if not a multiple of 128
    # Prefer >= 2 grid steps (v7x megacore) while keeping tiles large enough to
    # amortize the per-grid-step overhead.
    half = _round_up(pl.cdiv(B, 2), LANES)
    return min(tile_b, half)


def nbc_forward(x, params, *, count, order, tile_b=8192):
    """x: (B, input_size) float32. params: dict of (in,out) weights, (1,out) biases."""
    B, input_size = x.shape
    neuron = params["w2"].shape[0]
    output_size = params["wo"].shape[1]
    assert neuron == count * order

    p_buf, offs = pack_params(params)
    xT = jnp.transpose(x).astype(jnp.float32)               # (input_size, B)

    tile = _choose_tile(B, tile_b)
    grid = pl.cdiv(B, tile)                                  # ragged tail masked by Pallas

    kernel = functools.partial(
        nbc_forward_kernel,
        input_size=input_size, neuron=neuron, output_size=output_size,
        count=count, order=order,
        r_w1=offs["r_w1"], r_w2=offs["r_w2"], r_w3=offs["r_w3"],
        r_wo=offs["r_wo"], wo_rows=offs["wo_rows"],
        r_b1=offs["r_b1"], r_b2=offs["r_b2"], r_b3=offs["r_b3"], r_bo=offs["r_bo"])

    outT = pl.pallas_call(
        kernel,
        out_shape=jax.ShapeDtypeStruct((output_size, B), jnp.float32),
        grid=(grid,),
        in_specs=[
            pl.BlockSpec((input_size, tile), lambda i: (0, i)),      # x^T lane tiles
            pl.BlockSpec((offs["rows"], LANES), lambda i: (0, 0)),   # resident params
        ],
        out_specs=pl.BlockSpec((output_size, tile), lambda i: (0, i)),
        compiler_params=pltpu.CompilerParams(
            dimension_semantics=("parallel",)),
    )(xT, p_buf)

    return jnp.transpose(outT)                               # (B, output_size)


# ----------------------------------------------------------------------------
# Init + pure-JAX reference (mirrors PyTorch nn.Linear defaults / forward).
# ----------------------------------------------------------------------------
def init_params(key, input_size, count, order, output_size):
    neuron = count * order

    def linear(k, fan_in, fan_out):
        kw, kb = jax.random.split(k)
        bound = 1.0 / jnp.sqrt(fan_in)
        w = jax.random.uniform(kw, (fan_in, fan_out), jnp.float32, -bound, bound)
        b = jax.random.uniform(kb, (1, fan_out), jnp.float32, -bound, bound)
        return w, b

    k1, k2, k3, k4 = jax.random.split(key, 4)
    w1, b1 = linear(k1, input_size, neuron)
    w2, b2 = linear(k2, neuron, neuron)
    w3, b3 = linear(k3, neuron, neuron)
    wo, bo = linear(k4, neuron, output_size)
    return dict(w1=w1, b1=b1, w2=w2, b2=b2, w3=w3, b3=b3, wo=wo, bo=bo)


def nbc_forward_ref(x, params, *, count, order):
    hi = lax.Precision.HIGHEST
    h = jnp.dot(x, params["w1"], precision=hi) + params["b1"]
    h = _leaky_relu(h)
    h = jnp.dot(h, params["w2"], precision=hi) + params["b2"]
    parts = [h[:, (i - 1) * count:i * count] ** i for i in range(1, order + 1)]
    h = jnp.concatenate(parts, axis=1)
    h = jnp.dot(h, params["w3"], precision=hi) + params["b3"]
    h = _leaky_relu(h)
    return jnp.dot(h, params["wo"], precision=hi) + params["bo"]


if __name__ == "__main__":
    # Shapes consistent with the module: 2-D state-space barrier certificate.
    input_size = 2
    count = 8
    order = 4          # neuron_count = 32
    output_size = 1

    key = jax.random.PRNGKey(0)
    kx, kp, kx2 = jax.random.split(key, 3)
    params = init_params(kp, input_size, count, order, output_size)

    # Small batch (single grid step, full-dim lane block).
    x = jax.random.normal(kx, (8, input_size), jnp.float32)
    out = jax.block_until_ready(nbc_forward(x, params, count=count, order=order))
    ref = nbc_forward_ref(x, params, count=count, order=order)
    assert out.shape == (8, output_size)
    assert jnp.allclose(out, ref, atol=1e-4, rtol=1e-4), (out, ref)

    # Larger batch: multi-step grid, resident params, ragged (masked) last lane tile.
    x2 = jax.random.normal(kx2, (2500, input_size), jnp.float32)
    out2 = jax.block_until_ready(
        nbc_forward(x2, params, count=count, order=order, tile_b=8192))
    ref2 = nbc_forward_ref(x2, params, count=count, order=order)
    assert out2.shape == (2500, output_size)
    assert jnp.allclose(out2, ref2, atol=1e-4, rtol=1e-4)

    print("KERNEL_OK")
</pallas_src>

<mosaic_0001>
module attributes {stable_mosaic.version = 11 : i64} {
  func.func @nbc_forward_kernel(%arg0: i32, %arg1: memref<2x8xf32, #tpu.memory_space<vmem>>, %arg2: memref<208x128xf32, #tpu.memory_space<vmem>>, %arg3: memref<1x8xf32, #tpu.memory_space<vmem>>) attributes {dimension_semantics = [#tpu.dimension_semantics<parallel>], iteration_bounds = array<i64: 1>, scalar_prefetch = 0 : i64, scratch_operands = 0 : i64, tpu.core_type = #tpu.core_type<tc>, window_params = [{transform_indices = @transform_0, window_bounds = array<i64: 2, 8>}, {pipeline_mode = #tpu.pipeline_mode<synchronous>, transform_indices = @transform_1, window_bounds = array<i64: 208, 128>}, {transform_indices = @transform_2, window_bounds = array<i64: 1, 8>}]} {
    %c0 = arith.constant 0 : index
    %c0_0 = arith.constant 0 : index
    %0 = vector.load %arg1[%c0, %c0_0] : memref<2x8xf32, #tpu.memory_space<vmem>>, vector<2x8xf32>
    %c104 = arith.constant 104 : index
    %c0_1 = arith.constant 0 : index
    %1 = vector.load %arg2[%c104, %c0_1] : memref<208x128xf32, #tpu.memory_space<vmem>>, vector<32x1xf32>
    %c0_2 = arith.constant 0 : index
    %c0_3 = arith.constant 0 : index
    %2 = vector.load %arg2[%c0_2, %c0_3] : memref<208x128xf32, #tpu.memory_space<vmem>>, vector<32x2xf32>
    %3 = vector.extract_strided_slice %2 {offsets = [0, 0], sizes = [32, 1], strides = [1, 1]} : vector<32x2xf32> to vector<32x1xf32>
    %4 = vector.extract_strided_slice %0 {offsets = [0, 0], sizes = [1, 8], strides = [1, 1]} : vector<2x8xf32> to vector<1x8xf32>
    %5 = vector.broadcast %3 : vector<32x1xf32> to vector<32x8xf32>
    %6 = vector.broadcast %4 : vector<1x8xf32> to vector<32x8xf32>
    %7 = arith.mulf %5, %6 : vector<32x8xf32>
    %8 = vector.broadcast %1 : vector<32x1xf32> to vector<32x8xf32>
    %9 = arith.addf %8, %7 : vector<32x8xf32>
    %10 = vector.extract_strided_slice %2 {offsets = [0, 1], sizes = [32, 1], strides = [1, 1]} : vector<32x2xf32> to vector<32x1xf32>
    %11 = vector.extract_strided_slice %0 {offsets = [1, 0], sizes = [1, 8], strides = [1, 1]} : vector<2x8xf32> to vector<1x8xf32>
    %12 = vector.broadcast %10 : vector<32x1xf32> to vector<32x8xf32>
    %13 = vector.broadcast %11 : vector<1x8xf32> to vector<32x8xf32>
    %14 = arith.mulf %12, %13 : vector<32x8xf32>
    %15 = arith.addf %9, %14 : vector<32x8xf32>
    %cst = arith.constant 0.000000e+00 : f32
    %16 = vector.broadcast %cst : f32 to vector<32x8xf32>
    %17 = arith.cmpf ogt, %15, %16 : vector<32x8xf32>
    %cst_4 = arith.constant 0.00999999977 : f32
    %18 = vector.broadcast %cst_4 : f32 to vector<32x8xf32>
    %19 = arith.mulf %18, %15 : vector<32x8xf32>
    %20 = arith.select %17, %15, %19 : vector<32x8xi1>, vector<32x8xf32>
    %c32 = arith.constant 32 : index
    %c0_5 = arith.constant 0 : index
    %21 = vector.load %arg2[%c32, %c0_5] : memref<208x128xf32, #tpu.memory_space<vmem>>, vector<32x32xf32>
    %c136 = arith.constant 136 : index
    %c0_6 = arith.constant 0 : index
    %22 = vector.load %arg2[%c136, %c0_6] : memref<208x128xf32, #tpu.memory_space<vmem>>, vector<32x1xf32>
    %cst_7 = arith.constant dense<0.000000e+00> : vector<32x8xf32>
    %23 = tpu.matmul %21, %20, %cst_7 {dimension_numbers = #tpu.dot_dimension_numbers<[1], [0], [0], [1], [0, 0, 1, 1], [], []>, precision = #tpu.contract_precision<fp32>} : vector<32x32xf32>, vector<32x8xf32>, vector<32x8xf32> -> vector<32x8xf32>
    %24 = vector.broadcast %22 : vector<32x1xf32> to vector<32x8xf32>
    %25 = arith.addf %23, %24 : vector<32x8xf32>
    %26 = vector.extract_strided_slice %25 {offsets = [0, 0], sizes = [8, 8], strides = [1, 1]} : vector<32x8xf32> to vector<8x8xf32>
    %27 = vector.extract_strided_slice %25 {offsets = [8, 0], sizes = [8, 8], strides = [1, 1]} : vector<32x8xf32> to vector<8x8xf32>
    %28 = arith.mulf %27, %27 : vector<8x8xf32>
    %29 = vector.extract_strided_slice %25 {offsets = [16, 0], sizes = [8, 8], strides = [1, 1]} : vector<32x8xf32> to vector<8x8xf32>
    %30 = arith.mulf %29, %29 : vector<8x8xf32>
    %31 = arith.mulf %30, %29 : vector<8x8xf32>
    %32 = vector.extract_strided_slice %25 {offsets = [24, 0], sizes = [8, 8], strides = [1, 1]} : vector<32x8xf32> to vector<8x8xf32>
    %33 = arith.mulf %32, %32 : vector<8x8xf32>
    %34 = arith.mulf %33, %32 : vector<8x8xf32>
    %35 = arith.mulf %34, %32 : vector<8x8xf32>
    %36 = tpu.concatenate %26, %28, %31, %35 in 0 : vector<8x8xf32>, vector<8x8xf32>, vector<8x8xf32>, vector<8x8xf32> -> vector<32x8xf32>
    %c64 = arith.constant 64 : index
    %c0_8 = arith.constant 0 : index
    %37 = vector.load %arg2[%c64, %c0_8] : memref<208x128xf32, #tpu.memory_space<vmem>>, vector<32x32xf32>
    %c168 = arith.constant 168 : index
    %c0_9 = arith.constant 0 : index
    %38 = vector.load %arg2[%c168, %c0_9] : memref<208x128xf32, #tpu.memory_space<vmem>>, vector<32x1xf32>
    %cst_10 = arith.constant dense<0.000000e+00> : vector<32x8xf32>
    %39 = tpu.matmul %37, %36, %cst_10 {dimension_numbers = #tpu.dot_dimension_numbers<[1], [0], [0], [1], [0, 0, 1, 1], [], []>, precision = #tpu.contract_precision<fp32>} : vector<32x32xf32>, vector<32x8xf32>, vector<32x8xf32> -> vector<32x8xf32>
    %40 = vector.broadcast %38 : vector<32x1xf32> to vector<32x8xf32>
    %41 = arith.addf %39, %40 : vector<32x8xf32>
    %cst_11 = arith.constant 0.000000e+00 : f32
    %42 = vector.broadcast %cst_11 : f32 to vector<32x8xf32>
    %43 = arith.cmpf ogt, %41, %42 : vector<32x8xf32>
    %cst_12 = arith.constant 0.00999999977 : f32
    %44 = vector.broadcast %cst_12 : f32 to vector<32x8xf32>
    %45 = arith.mulf %44, %41 : vector<32x8xf32>
    %46 = arith.select %43, %41, %45 : vector<32x8xi1>, vector<32x8xf32>
    %c96 = arith.constant 96 : index
    %c0_13 = arith.constant 0 : index
    %47 = vector.load %arg2[%c96, %c0_13] : memref<208x128xf32, #tpu.memory_space<vmem>>, vector<8x32xf32>
    %c200 = arith.constant 200 : index
    %c0_14 = arith.constant 0 : index
    %48 = vector.load %arg2[%c200, %c0_14] : memref<208x128xf32, #tpu.memory_space<vmem>>, vector<1x1xf32>
    %cst_15 = arith.constant dense<0.000000e+00> : vector<8x8xf32>
    %49 = tpu.matmul %47, %46, %cst_15 {dimension_numbers = #tpu.dot_dimension_numbers<[1], [0], [0], [1], [0, 0, 1, 1], [], []>, precision = #tpu.contract_precision<fp32>} : vector<8x32xf32>, vector<32x8xf32>, vector<8x8xf32> -> vector<8x8xf32>
    %50 = vector.extract_strided_slice %49 {offsets = [0, 0], sizes = [1, 8], strides = [1, 1]} : vector<8x8xf32> to vector<1x8xf32>
    %51 = vector.broadcast %48 : vector<1x1xf32> to vector<1x8xf32>
    %52 = arith.addf %50, %51 : vector<1x8xf32>
    %c0_16 = arith.constant 0 : index
    %c0_17 = arith.constant 0 : index
    %53 = vector.load %arg3[%c0_16, %c0_17] : memref<1x8xf32, #tpu.memory_space<vmem>>, vector<1x8xf32>
    tpu.vector_store %arg3[%c0_16, %c0_17], %52 {strides = array<i32>} : memref<1x8xf32, #tpu.memory_space<vmem>>, vector<1x8xf32>,
    return
  }
  func.func @transform_0(%arg0: i32) -> (i32, i32) {
    %c0_i32 = arith.constant 0 : i32
    %c0_i32_0 = arith.constant 0 : i32
    return %c0_i32, %arg0 : i32, i32
  }
  func.func @transform_1(%arg0: i32) -> (i32, i32) {
    %c0_i32 = arith.constant 0 : i32
    %c0_i32_0 = arith.constant 0 : i32
    %c0_i32_1 = arith.constant 0 : i32
    return %c0_i32, %c0_i32_0 : i32, i32
  }
  func.func @transform_2(%arg0: i32) -> (i32, i32) {
    %c0_i32 = arith.constant 0 : i32
    %c0_i32_0 = arith.constant 0 : i32
    return %c0_i32, %arg0 : i32, i32
  }
}

</mosaic_0001>

<llo_original>
// kernel: tpu_custom_call.1
$region0: #{tpu_custom_call.1}
  #allocation0 [shape = 'u32[]', space=smem, size = 0x4, offset = 0x4, fixed_abs, tag = 'smem constant byte address 0x4 - core index']
  #allocation1 [shape = 'u32[144,128]{1,0:T(1,128)}', space=vmem, size = 0x12000, scoped, tag = 'internal scratch']
  %s0 = inlined_call_operand.hbm [shape: f32[2,8], index: 0, kind: input, shape index: {}]
  %s1 = inlined_call_operand.hbm [shape: f32[208,128], index: 1, kind: input, shape index: {}]
  %s2 = inlined_call_operand.hbm [shape: f32[1,8], index: 2, kind: output, shape index: {}]
  %s3 = sld [smem:[#allocation0]]
  $region26: #{tpu_custom_call.1} parent=0
    _
  %s5 = ssub.s32 1, %s3
  %s6 = scalar_select 0, %s5, %s3
  $region1: #{tpu_custom_call.1} parent=0
    #allocation2 [shape = 'u8[1024]{0}', space=vmem, size = 0x400, scoped, tag = 'input window, operand 0, single buffered']
    #allocation3 [shape = 's32[1]{0}', space=sflag, size = 0x4, scoped, tag = 'scoped memory for tpu_custom_call.1']
    #allocation4 [shape = 's32[1]{0}', space=sflag, size = 0x4, scoped, tag = 'scoped memory for tpu_custom_call.1']
    #allocation5 [shape = 'u8[106496]{0}', space=vmem, size = 0x1a000, scoped, tag = 'input window, operand 1, single buffered']
    #allocation6 [shape = 's32[1]{0}', space=sflag, size = 0x4, scoped, tag = 'scoped memory for tpu_custom_call.1']
    #allocation7 [shape = 'u8[512]{0}', space=vmem, size = 0x400, scoped, tag = 'output window, operand 0, single buffered']
    %7 = vsyncpa [#allocation3], 0
    %8 = vsyncpa [#allocation6], 0
    %9 = vsyncpa [#allocation4], 0
    // Predicated region
    $region2: #{tpu_custom_call.1} parent=1 // pred_check
      _
    $region3: #{tpu_custom_call.1} parent=1 // pred_check_branch
      %11 = sbr.rel (0) target = $region5
    $region4: #{tpu_custom_call.1} parent=1 // pred_region
      %s13 = ssub.s32 32, 32
      %14 = vsyncadd [#allocation3], %s13
      %s16 = sshll.u32 [#allocation2], 4
      %s17 = int_to_ptr.vmem [resolvable:$true] %s16
      %19 = dma.hbm_to_vmem [thread:$0]  %s0, 32, %s17, [#allocation3]
    $region5: #{tpu_custom_call.1} parent=1 // pred_fallthru
      _
    // Predicated region
    $region6: #{tpu_custom_call.1} parent=1 // pred_check
      _
    $region7: #{tpu_custom_call.1} parent=1 // pred_check_branch
      %21 = sbr.rel (0) target = $region9
    $region8: #{tpu_custom_call.1} parent=1 // pred_region
      %s23 = ssub.s32 3328, 3328
      %24 = vsyncadd [#allocation6], %s23
      %s25 = sshll.u32 [#allocation5], 4
      %s26 = int_to_ptr.vmem [resolvable:$true] %s25
      %31 = dma.hbm_to_vmem [thread:$0]  %s1, 3328, %s26, [#allocation6], 128, 128, 8
    $region9: #{tpu_custom_call.1} parent=1 // pred_fallthru
      _
    // Predicated region
    $region10: #{tpu_custom_call.1} parent=1 // pred_check
      _
    $region11: #{tpu_custom_call.1} parent=1 // pred_check_branch
      %33 = sbr.rel (0) target = $region13
    $region12: #{tpu_custom_call.1} parent=1 // pred_region
      %34 = dma.done [#allocation3], 32
    $region13: #{tpu_custom_call.1} parent=1 // pred_fallthru
      _
    // Predicated region
    $region14: #{tpu_custom_call.1} parent=1 // pred_check
      _
    $region15: #{tpu_custom_call.1} parent=1 // pred_check_branch
      %36 = sbr.rel (0) target = $region17
    $region16: #{tpu_custom_call.1} parent=1 // pred_region
      %37 = dma.done [#allocation6], 3328
    $region17: #{tpu_custom_call.1} parent=1 // pred_fallthru
      _
    %v38 = vld [vmem:[#allocation2] sm:$0x3]
    %v39 = vld [vmem:[#allocation5 + $0x68] sm:$0xff]
    %v40 = vld [vmem:[#allocation5 + $0x70] sm:$0xff]
    %v41 = vld [vmem:[#allocation5 + $0x78] sm:$0xff]
    %v42 = vld [vmem:[#allocation5 + $0x80] sm:$0xff]
    %v43 = vld [vmem:[#allocation5] sm:$0xff]
    %v44 = vld [vmem:[#allocation5 + $0x8] sm:$0xff]
    %v45 = vld [vmem:[#allocation5 + $0x10] sm:$0xff]
    %v46 = vld [vmem:[#allocation5 + $0x18] sm:$0xff]
    %48 = vset.pattern.permute.xlu0 0
    %49 = vperm.xlu0 %48, %v43
    %v50 = vpop.permute.xlu0 %49
    %53 = vset.pattern.permute.xlu0 0
    %54 = vperm.xlu0 %53, %v44
    %v55 = vpop.permute.xlu0 %54
    %58 = vset.pattern.permute.xlu0 0
    %59 = vperm.xlu0 %58, %v45
    %v60 = vpop.permute.xlu0 %59
    %63 = vset.pattern.permute.xlu0 0
    %64 = vperm.xlu0 %63, %v46
    %v65 = vpop.permute.xlu0 %64
    %v67 = vlaneseq
    %v68 = vshrl.u32 %v67, 7
    %v69 = vsub.s32 0, %v68
    %v70 = vrot.slane %v38, %v69
    %v71 = vmul.f32 %v50, %v70
    %v72 = vmul.f32 %v55, %v70
    %v73 = vmul.f32 %v60, %v70
    %v74 = vmul.f32 %v65, %v70
    %76 = vset.pattern.permute.xlu0 0
    %77 = vperm.xlu0 %76, %v39
    %v78 = vpop.permute.xlu0 %77
    %81 = vset.pattern.permute.xlu0 0
    %82 = vperm.xlu0 %81, %v40
    %v83 = vpop.permute.xlu0 %82
    %86 = vset.pattern.permute.xlu0 0
    %87 = vperm.xlu0 %86, %v41
    %v88 = vpop.permute.xlu0 %87
    %91 = vset.pattern.permute.xlu0 0
    %92 = vperm.xlu0 %91, %v42
    %v93 = vpop.permute.xlu0 %92
    %v95 = vadd.f32 %v78, %v71
    %v96 = vadd.f32 %v83, %v72
    %v97 = vadd.f32 %v88, %v73
    %v98 = vadd.f32 %v93, %v74
    %99 = vset.pattern.permute.xlu0 1
    %100 = vperm.xlu0 %99, %v43
    %v101 = vpop.permute.xlu0 %100
    %103 = vset.pattern.permute.xlu0 1
    %104 = vperm.xlu0 %103, %v44
    %v105 = vpop.permute.xlu0 %104
    %107 = vset.pattern.permute.xlu0 1
    %108 = vperm.xlu0 %107, %v45
    %v109 = vpop.permute.xlu0 %108
    %111 = vset.pattern.permute.xlu0 1
    %112 = vperm.xlu0 %111, %v46
    %v113 = vpop.permute.xlu0 %112
    %v115 = vlaneseq
    %v116 = vshrl.u32 %v115, 7
    %v117 = vsub.s32 1, %v116
    %v118 = vrot.slane %v38, %v117
    %v119 = vmul.f32 %v101, %v118
    %v120 = vmul.f32 %v105, %v118
    %v121 = vmul.f32 %v109, %v118
    %v122 = vmul.f32 %v113, %v118
    %v123 = vadd.f32 %v95, %v119
    %v124 = vadd.f32 %v96, %v120
    %v125 = vadd.f32 %v97, %v121
    %v126 = vadd.f32 %v98, %v122
    %vm127 = vcmp.gt.f32.partialorder %v123, 0.0
    %vm128 = vcmp.gt.f32.partialorder %v124, 0.0
    %vm129 = vcmp.gt.f32.partialorder %v125, 0.0
    %vm130 = vcmp.gt.f32.partialorder %v126, 0.0
    %v131 = vmul.f32 %v123, 0.01
    %v132 = vmul.f32 %v124, 0.01
    %v133 = vmul.f32 %v125, 0.01
    %v134 = vmul.f32 %v126, 0.01
    %v135 = vsel %vm127, %v123, %v131
    %v136 = vsel %vm128, %v124, %v132
    %v137 = vsel %vm129, %v125, %v133
    %v138 = vsel %vm130, %v126, %v134
    %v139 = vld [vmem:[#allocation5 + $0x20] sm:$0xff]
    %v140 = vld [vmem:[#allocation5 + $0x28] sm:$0xff]
    %v141 = vld [vmem:[#allocation5 + $0x30] sm:$0xff]
    %v142 = vld [vmem:[#allocation5 + $0x38] sm:$0xff]
    %v143 = vld [vmem:[#allocation5 + $0x88] sm:$0xff]
    %v144 = vld [vmem:[#allocation5 + $0x90] sm:$0xff]
    %v145 = vld [vmem:[#allocation5 + $0x98] sm:$0xff]
    %v146 = vld [vmem:[#allocation5 + $0xa0] sm:$0xff]
    %148 = vset.pattern.permute.xlu0 0
    %149 = vperm.xlu0 %148, %v143
    %v150 = vpop.permute.xlu0 %149
    %153 = vset.pattern.permute.xlu0 0
    %154 = vperm.xlu0 %153, %v144
    %v155 = vpop.permute.xlu0 %154
    %158 = vset.pattern.permute.xlu0 0
    %159 = vperm.xlu0 %158, %v145
    %v160 = vpop.permute.xlu0 %159
    %163 = vset.pattern.permute.xlu0 0
    %164 = vperm.xlu0 %163, %v146
    %v165 = vpop.permute.xlu0 %164
    %vm167 = vcmask 261120
    %v169 = vsel %vm167, %v139, 0
    %v172 = vsel %vm167, %v140, 0
    %v175 = vsel %vm167, %v141, 0
    %v178 = vsel %vm167, %v142, 0
    %180 = vmatprep.subr.mxu0 0.0
    %v181 = vand.u32 %v135, 4294901760
    %182 = vmatpush1.msra.mxu0 %v181
    %183 = vmatprep.subr.mxu0 0.0
    %v184 = vand.u32 %v136, 4294901760
    %185 = vmatpush1.msra.mxu0 %v184
    %186 = vmatprep.subr.mxu0 0.0
    %v187 = vand.u32 %v137, 4294901760
    %188 = vmatpush1.msra.mxu0 %v187
    %189 = vmatprep.subr.mxu0 0.0
    %v190 = vand.u32 %v138, 4294901760
    %191 = vmatpush1.msra.mxu0 %v190
    %192 = vmatprep.subr.mxu0 0.0
    %193 = vmatpush1.msra.mxu0 0.0
    %194 = vmatprep.subr.mxu0 0.0
    %195 = vmatpush1.msra.mxu0 0.0
    %196 = vmatprep.subr.mxu0 0.0
    %197 = vmatpush1.msra.mxu0 0.0
    %198 = vmatprep.subr.mxu0 0.0
    %199 = vmatpush1.msra.mxu0 0.0
    %200 = vmatprep.subr.mxu0 0.0
    %201 = vmatpush1.msra.mxu0 0.0
    %202 = vmatprep.subr.mxu0 0.0
    %203 = vmatpush1.msra.mxu0 0.0
    %204 = vmatprep.subr.mxu0 0.0
    %205 = vmatpush1.msra.mxu0 0.0
    %206 = vmatprep.subr.mxu0 0.0
    %207 = vmatpush1.msra.mxu0 0.0
    %208 = vmatprep.subr.mxu0 0.0
    %209 = vmatpush1.msra.mxu0 0.0
    %210 = vmatprep.subr.mxu0 0.0
    %211 = vmatpush1.msra.mxu0 0.0
    %212 = vmatprep.subr.mxu0 0.0
    %213 = vmatpush1.msra.mxu0 0.0
    %214 = vmatprep.subr.mxu0 0.0
    %215 = vmatpush1.msra.mxu0 0.0
    %216 = vmatprep.subr.mxu0 0.0
    %217 = vmatpush1.msra.mxu0 0.0
    %218 = vmatprep.subr.mxu0 0.0
    %219 = vmatpush1.msra.mxu0 0.0
    %220 = vmatprep.subr.mxu0 0.0
    %221 = vmatpush1.msra.mxu0 0.0
    %222 = vmatprep.subr.mxu0 0.0
    %223 = vmatpush1.msra.mxu0 0.0
    %224 = vmatprep.subr.mxu0 0.0
    %225 = vmatpush1.msra.mxu0 0.0
    %226 = vmatprep.subr.mxu0 0.0
    %227 = vmatpush1.msra.mxu0 0.0
    %228 = vmatprep.subr.mxu0 0.0
    %229 = vmatpush1.msra.mxu0 0.0
    %230 = vmatprep.subr.mxu0 0.0
    %231 = vmatpush1.msra.mxu0 0.0
    %232 = vmatprep.subr.mxu0 0.0
    %233 = vmatpush1.msra.mxu0 0.0
    %234 = vmatprep.subr.mxu0 0.0
    %235 = vmatpush1.msra.mxu0 0.0
    %236 = vmatprep.subr.mxu0 0.0
    %237 = vmatpush1.msra.mxu0 0.0
    %238 = vmatprep.subr.mxu0 0.0
    %239 = vmatpush1.msra.mxu0 0.0
    %240 = vmatprep.subr.mxu0 0.0
    %241 = vmatpush1.msra.mxu0 0.0
    %242 = vmatprep.subr.mxu0 0.0
    %243 = vmatpush1.msra.mxu0 0.0
    %244 = vmatprep.subr.mxu0 0.0
    %245 = vmatpush1.msra.mxu0 0.0
    %246 = vmatprep.subr.mxu0 0.0
    %247 = vmatpush1.msra.mxu0 0.0
    %248 = vmatprep.mubr.f32.mxu0 0.0
    %v249 = vand.u32 %v169, 4294901760
    %v250 = vsub.f32 %v169, %v249
    %v251 = vand.u32 %v250, 4294901760
    %v252 = vsub.f32 %v250, %v251
    %v253 = vand.u32 %v252, 4294901760
    %254 = vmatmul.mubr.f32.gmra.mrb[0].mxu0 %v253
    %v255 = vpop.f32.mrb[0].mxu0
    %v256 = vadd.f32 %v150, %v255
    %v257 = vpop.f32.mrb[0].mxu0
    %258 = vmatprep.mubr.f32.mxu0 0.0
    %v259 = vand.u32 %v172, 4294901760
    %v260 = vsub.f32 %v172, %v259
    %v261 = vand.u32 %v260, 4294901760
    %v262 = vsub.f32 %v260, %v261
    %v263 = vand.u32 %v262, 4294901760
    %264 = vmatmul.mubr.f32.gmra.mrb[0].mxu0 %v263
    %v265 = vpop.f32.mrb[0].mxu0
    %v266 = vadd.f32 %v155, %v265
    %v267 = vpop.f32.mrb[0].mxu0
    %268 = vmatprep.mubr.f32.mxu0 0.0
    %v269 = vand.u32 %v175, 4294901760
    %v270 = vsub.f32 %v175, %v269
    %v271 = vand.u32 %v270, 4294901760
    %v272 = vsub.f32 %v270, %v271
    %v273 = vand.u32 %v272, 4294901760
    %274 = vmatmul.mubr.f32.gmra.mrb[0].mxu0 %v273
    %v275 = vpop.f32.mrb[0].mxu0
    %v276 = vadd.f32 %v160, %v275
    %v277 = vpop.f32.mrb[0].mxu0
    %278 = vmatprep.mubr.f32.mxu0 0.0
    %v279 = vand.u32 %v178, 4294901760
    %v280 = vsub.f32 %v178, %v279
    %v281 = vand.u32 %v280, 4294901760
    %v282 = vsub.f32 %v280, %v281
    %v283 = vand.u32 %v282, 4294901760
    %284 = vmatmul.mubr.f32.gmra.mrb[0].mxu0 %v283
    %v285 = vpop.f32.mrb[0].mxu0
    %v286 = vadd.f32 %v165, %v285
    %v287 = vpop.f32.mrb[0].mxu0
    %288 = vdwg.mxu0
    %289 = vmatprep.subr.mxu0 0.0
    %v290 = vand.u32 %v135, 4294901760
    %v291 = vsub.f32 %v135, %v290
    %v292 = vand.u32 %v291, 4294901760
    %v293 = vsub.f32 %v291, %v292
    %v294 = vand.u32 %v293, 4294901760
    %295 = vmatpush1.msra.mxu0 %v294
    %296 = vmatprep.subr.mxu0 0.0
    %v297 = vand.u32 %v136, 4294901760
    %v298 = vsub.f32 %v136, %v297
    %v299 = vand.u32 %v298, 4294901760
    %v300 = vsub.f32 %v298, %v299
    %v301 = vand.u32 %v300, 4294901760
    %302 = vmatpush1.msra.mxu0 %v301
    %303 = vmatprep.subr.mxu0 0.0
    %v304 = vand.u32 %v137, 4294901760
    %v305 = vsub.f32 %v137, %v304
    %v306 = vand.u32 %v305, 4294901760
    %v307 = vsub.f32 %v305, %v306
    %v308 = vand.u32 %v307, 4294901760
    %309 = vmatpush1.msra.mxu0 %v308
    %310 = vmatprep.subr.mxu0 0.0
    %v311 = vand.u32 %v138, 4294901760
    %v312 = vsub.f32 %v138, %v311
    %v313 = vand.u32 %v312, 4294901760
    %v314 = vsub.f32 %v312, %v313
    %v315 = vand.u32 %v314, 4294901760
    %316 = vmatpush1.msra.mxu0 %v315
    %317 = vmatprep.subr.mxu0 0.0
    %318 = vmatpush1.msra.mxu0 0.0
    %319 = vmatprep.subr.mxu0 0.0
    %320 = vmatpush1.msra.mxu0 0.0
    %321 = vmatprep.subr.mxu0 0.0
    %322 = vmatpush1.msra.mxu0 0.0
    %323 = vmatprep.subr.mxu0 0.0
    %324 = vmatpush1.msra.mxu0 0.0
    %325 = vmatprep.subr.mxu0 0.0
    %326 = vmatpush1.msra.mxu0 0.0
    %327 = vmatprep.subr.mxu0 0.0
    %328 = vmatpush1.msra.mxu0 0.0
    %329 = vmatprep.subr.mxu0 0.0
    %330 = vmatpush1.msra.mxu0 0.0
    %331 = vmatprep.subr.mxu0 0.0
    %332 = vmatpush1.msra.mxu0 0.0
    %333 = vmatprep.subr.mxu0 0.0
    %334 = vmatpush1.msra.mxu0 0.0
    %335 = vmatprep.subr.mxu0 0.0
    %336 = vmatpush1.msra.mxu0 0.0
    %337 = vmatprep.subr.mxu0 0.0
    %338 = vmatpush1.msra.mxu0 0.0
    %339 = vmatprep.subr.mxu0 0.0
    %340 = vmatpush1.msra.mxu0 0.0
    %341 = vmatprep.subr.mxu0 0.0
    %342 = vmatpush1.msra.mxu0 0.0
    %343 = vmatprep.subr.mxu0 0.0
    %344 = vmatpush1.msra.mxu0 0.0
    %345 = vmatprep.subr.mxu0 0.0
    %346 = vmatpush1.msra.mxu0 0.0
    %347 = vmatprep.subr.mxu0 0.0
    %348 = vmatpush1.msra.mxu0 0.0
    %349 = vmatprep.subr.mxu0 0.0
    %350 = vmatpush1.msra.mxu0 0.0
    %351 = vmatprep.subr.mxu0 0.0
    %352 = vmatpush1.msra.mxu0 0.0
    %353 = vmatprep.subr.mxu0 0.0
    %354 = vmatpush1.msra.mxu0 0.0
    %355 = vmatprep.subr.mxu0 0.0
    %356 = vmatpush1.msra.mxu0 0.0
    %357 = vmatprep.subr.mxu0 0.0
    %358 = vmatpush1.msra.mxu0 0.0
    %359 = vmatprep.subr.mxu0 0.0
    %360 = vmatpush1.msra.mxu0 0.0
    %361 = vmatprep.subr.mxu0 0.0
    %362 = vmatpush1.msra.mxu0 0.0
    %363 = vmatprep.subr.mxu0 0.0
    %364 = vmatpush1.msra.mxu0 0.0
    %365 = vmatprep.subr.mxu0 0.0
    %366 = vmatpush1.msra.mxu0 0.0
    %367 = vmatprep.subr.mxu0 0.0
    %368 = vmatpush1.msra.mxu0 0.0
    %369 = vmatprep.subr.mxu0 0.0
    %370 = vmatpush1.msra.mxu0 0.0
    %371 = vmatprep.subr.mxu0 0.0
    %372 = vmatpush1.msra.mxu0 0.0
    %373 = vmatprep.mubr.f32.mxu0 0.0
    %v374 = vand.u32 %v169, 4294901760
    %375 = vmatmul.mubr.f32.gmra.mrb[0].mxu0 %v374
    %v376 = vpop.f32.mrb[0].mxu0
    %v377 = vadd.f32 %v256, %v376
    %v378 = vpop.f32.mrb[0].mxu0
    %379 = vmatprep.mubr.f32.mxu0 0.0
    %v380 = vand.u32 %v172, 4294901760
    %381 = vmatmul.mubr.f32.gmra.mrb[0].mxu0 %v380
    %v382 = vpop.f32.mrb[0].mxu0
    %v383 = vadd.f32 %v266, %v382
    %v384 = vpop.f32.mrb[0].mxu0
    %385 = vmatprep.mubr.f32.mxu0 0.0
    %v386 = vand.u32 %v175, 4294901760
    %387 = vmatmul.mubr.f32.gmra.mrb[0].mxu0 %v386
    %v388 = vpop.f32.mrb[0].mxu0
    %v389 = vadd.f32 %v276, %v388
    %v390 = vpop.f32.mrb[0].mxu0
    %391 = vmatprep.mubr.f32.mxu0 0.0
    %v392 = vand.u32 %v178, 4294901760
    %393 = vmatmul.mubr.f32.gmra.mrb[0].mxu0 %v392
    %v394 = vpop.f32.mrb[0].mxu0
    %v395 = vadd.f32 %v286, %v394
    %v396 = vpop.f32.mrb[0].mxu0
    %397 = vdwg.mxu0
    %398 = vmatprep.subr.mxu0 0.0
    %v399 = vand.u32 %v135, 4294901760
    %v400 = vsub.f32 %v135, %v399
    %401 = vmatpush1.msra.mxu0 %v400
    %402 = vmatprep.subr.mxu0 0.0
    %v403 = vand.u32 %v136, 4294901760
    %v404 = vsub.f32 %v136, %v403
    %405 = vmatpush1.msra.mxu0 %v404
    %406 = vmatprep.subr.mxu0 0.0
    %v407 = vand.u32 %v137, 4294901760
    %v408 = vsub.f32 %v137, %v407
    %409 = vmatpush1.msra.mxu0 %v408
    %410 = vmatprep.subr.mxu0 0.0
    %v411 = vand.u32 %v138, 4294901760
    %v412 = vsub.f32 %v138, %v411
    %413 = vmatpush1.msra.mxu0 %v412
    %414 = vmatprep.subr.mxu0 0.0
    %415 = vmatpush1.msra.mxu0 0.0
    %416 = vmatprep.subr.mxu0 0.0
    %417 = vmatpush1.msra.mxu0 0.0
    %418 = vmatprep.subr.mxu0 0.0
    %419 = vmatpush1.msra.mxu0 0.0
    %420 = vmatprep.subr.mxu0 0.0
    %421 = vmatpush1.msra.mxu0 0.0
    %422 = vmatprep.subr.mxu0 0.0
    %423 = vmatpush1.msra.mxu0 0.0
    %424 = vmatprep.subr.mxu0 0.0
    %425 = vmatpush1.msra.mxu0 0.0
    %426 = vmatprep.subr.mxu0 0.0
    %427 = vmatpush1.msra.mxu0 0.0
    %428 = vmatprep.subr.mxu0 0.0
    %429 = vmatpush1.msra.mxu0 0.0
    %430 = vmatprep.subr.mxu0 0.0
    %431 = vmatpush1.msra.mxu0 0.0
    %432 = vmatprep.subr.mxu0 0.0
    %433 = vmatpush1.msra.mxu0 0.0
    %434 = vmatprep.subr.mxu0 0.0
    %435 = vmatpush1.msra.mxu0 0.0
    %436 = vmatprep.subr.mxu0 0.0
    %437 = vmatpush1.msra.mxu0 0.0
    %438 = vmatprep.subr.mxu0 0.0
    %439 = vmatpush1.msra.mxu0 0.0
    %440 = vmatprep.subr.mxu0 0.0
    %441 = vmatpush1.msra.mxu0 0.0
    %442 = vmatprep.subr.mxu0 0.0
    %443 = vmatpush1.msra.mxu0 0.0
    %444 = vmatprep.subr.mxu0 0.0
    %445 = vmatpush1.msra.mxu0 0.0
    %446 = vmatprep.subr.mxu0 0.0
    %447 = vmatpush1.msra.mxu0 0.0
    %448 = vmatprep.subr.mxu0 0.0
    %449 = vmatpush1.msra.mxu0 0.0
    %450 = vmatprep.subr.mxu0 0.0
    %451 = vmatpush1.msra.mxu0 0.0
    %452 = vmatprep.subr.mxu0 0.0
    %453 = vmatpush1.msra.mxu0 0.0
    %454 = vmatprep.subr.mxu0 0.0
    %455 = vmatpush1.msra.mxu0 0.0
    %456 = vmatprep.subr.mxu0 0.0
    %457 = vmatpush1.msra.mxu0 0.0
    %458 = vmatprep.subr.mxu0 0.0
    %459 = vmatpush1.msra.mxu0 0.0
    %460 = vmatprep.subr.mxu0 0.0
    %461 = vmatpush1.msra.mxu0 0.0
    %462 = vmatprep.subr.mxu0 0.0
    %463 = vmatpush1.msra.mxu0 0.0
    %464 = vmatprep.subr.mxu0 0.0
    %465 = vmatpush1.msra.mxu0 0.0
    %466 = vmatprep.subr.mxu0 0.0
    %467 = vmatpush1.msra.mxu0 0.0
    %468 = vmatprep.subr.mxu0 0.0
    %469 = vmatpush1.msra.mxu0 0.0
    %470 = vmatprep.mubr.f32.mxu0 0.0
    %v471 = vand.u32 %v169, 4294901760
    %v472 = vsub.f32 %v169, %v471
    %473 = vmatmul.mubr.f32.gmra.mrb[0].mxu0 %v472
    %v474 = vpop.f32.mrb[0].mxu0
    %v475 = vadd.f32 %v377, %v474
    %v476 = vpop.f32.mrb[0].mxu0
    %477 = vmatprep.mubr.f32.mxu0 0.0
    %v478 = vand.u32 %v172, 4294901760
    %v479 = vsub.f32 %v172, %v478
    %480 = vmatmul.mubr.f32.gmra.mrb[0].mxu0 %v479
    %v481 = vpop.f32.mrb[0].mxu0
    %v482 = vadd.f32 %v383, %v481
    %v483 = vpop.f32.mrb[0].mxu0
    %484 = vmatprep.mubr.f32.mxu0 0.0
    %v485 = vand.u32 %v175, 4294901760
    %v486 = vsub.f32 %v175, %v485
    %487 = vmatmul.mubr.f32.gmra.mrb[0].mxu0 %v486
    %v488 = vpop.f32.mrb[0].mxu0
    %v489 = vadd.f32 %v389, %v488
    %v490 = vpop.f32.mrb[0].mxu0
    %491 = vmatprep.mubr.f32.mxu0 0.0
    %v492 = vand.u32 %v178, 4294901760
    %v493 = vsub.f32 %v178, %v492
    %494 = vmatmul.mubr.f32.gmra.mrb[0].mxu0 %v493
    %v495 = vpop.f32.mrb[0].mxu0
    %v496 = vadd.f32 %v395, %v495
    %v497 = vpop.f32.mrb[0].mxu0
    %498 = vdwg.mxu0
    %499 = vmatprep.subr.mxu0 0.0
    %v500 = vand.u32 %v135, 4294901760
    %501 = vmatpush1.msra.mxu0 %v500
    %502 = vmatprep.subr.mxu0 0.0
    %v503 = vand.u32 %v136, 4294901760
    %504 = vmatpush1.msra.mxu0 %v503
    %505 = vmatprep.subr.mxu0 0.0
    %v506 = vand.u32 %v137, 4294901760
    %507 = vmatpush1.msra.mxu0 %v506
    %508 = vmatprep.subr.mxu0 0.0
    %v509 = vand.u32 %v138, 4294901760
    %510 = vmatpush1.msra.mxu0 %v509
    %511 = vmatprep.subr.mxu0 0.0
    %512 = vmatpush1.msra.mxu0 0.0
    %513 = vmatprep.subr.mxu0 0.0
    %514 = vmatpush1.msra.mxu0 0.0
    %515 = vmatprep.subr.mxu0 0.0
    %516 = vmatpush1.msra.mxu0 0.0
    %517 = vmatprep.subr.mxu0 0.0
    %518 = vmatpush1.msra.mxu0 0.0
    %519 = vmatprep.subr.mxu0 0.0
    %520 = vmatpush1.msra.mxu0 0.0
    %521 = vmatprep.subr.mxu0 0.0
    %522 = vmatpush1.msra.mxu0 0.0
    %523 = vmatprep.subr.mxu0 0.0
    %524 = vmatpush1.msra.mxu0 0.0
    %525 = vmatprep.subr.mxu0 0.0
    %526 = vmatpush1.msra.mxu0 0.0
    %527 = vmatprep.subr.mxu0 0.0
    %528 = vmatpush1.msra.mxu0 0.0
    %529 = vmatprep.subr.mxu0 0.0
    %530 = vmatpush1.msra.mxu0 0.0
    %531 = vmatprep.subr.mxu0 0.0
    %532 = vmatpush1.msra.mxu0 0.0
    %533 = vmatprep.subr.mxu0 0.0
    %534 = vmatpush1.msra.mxu0 0.0
    %535 = vmatprep.subr.mxu0 0.0
    %536 = vmatpush1.msra.mxu0 0.0
    %537 = vmatprep.subr.mxu0 0.0
    %538 = vmatpush1.msra.mxu0 0.0
    %539 = vmatprep.subr.mxu0 0.0
    %540 = vmatpush1.msra.mxu0 0.0
    %541 = vmatprep.subr.mxu0 0.0
    %542 = vmatpush1.msra.mxu0 0.0
    %543 = vmatprep.subr.mxu0 0.0
    %544 = vmatpush1.msra.mxu0 0.0
    %545 = vmatprep.subr.mxu0 0.0
    %546 = vmatpush1.msra.mxu0 0.0
    %547 = vmatprep.subr.mxu0 0.0
    %548 = vmatpush1.msra.mxu0 0.0
    %549 = vmatprep.subr.mxu0 0.0
    %550 = vmatpush1.msra.mxu0 0.0
    %551 = vmatprep.subr.mxu0 0.0
    %552 = vmatpush1.msra.mxu0 0.0
    %553 = vmatprep.subr.mxu0 0.0
    %554 = vmatpush1.msra.mxu0 0.0
    %555 = vmatprep.subr.mxu0 0.0
    %556 = vmatpush1.msra.mxu0 0.0
    %557 = vmatprep.subr.mxu0 0.0
    %558 = vmatpush1.msra.mxu0 0.0
    %559 = vmatprep.subr.mxu0 0.0
    %560 = vmatpush1.msra.mxu0 0.0
    %561 = vmatprep.subr.mxu0 0.0
    %562 = vmatpush1.msra.mxu0 0.0
    %563 = vmatprep.subr.mxu0 0.0
    %564 = vmatpush1.msra.mxu0 0.0
    %565 = vmatprep.subr.mxu0 0.0
    %566 = vmatpush1.msra.mxu0 0.0
    %567 = vmatprep.mubr.f32.mxu0 0.0
    %v568 = vand.u32 %v169, 4294901760
    %v569 = vsub.f32 %v169, %v568
    %v570 = vand.u32 %v569, 4294901760
    %571 = vmatmul.mubr.f32.gmra.mrb[0].mxu0 %v570
    %v572 = vpop.f32.mrb[0].mxu0
    %v573 = vadd.f32 %v475, %v572
    %v574 = vpop.f32.mrb[0].mxu0
    %575 = vmatprep.mubr.f32.mxu0 0.0
    %v576 = vand.u32 %v172, 4294901760
    %v577 = vsub.f32 %v172, %v576
    %v578 = vand.u32 %v577, 4294901760
    %579 = vmatmul.mubr.f32.gmra.mrb[0].mxu0 %v578
    %v580 = vpop.f32.mrb[0].mxu0
    %v581 = vadd.f32 %v482, %v580
    %v582 = vpop.f32.mrb[0].mxu0
    %583 = vmatprep.mubr.f32.mxu0 0.0
    %v584 = vand.u32 %v175, 4294901760
    %v585 = vsub.f32 %v175, %v584
    %v586 = vand.u32 %v585, 4294901760
    %587 = vmatmul.mubr.f32.gmra.mrb[0].mxu0 %v586
    %v588 = vpop.f32.mrb[0].mxu0
    %v589 = vadd.f32 %v489, %v588
    %v590 = vpop.f32.mrb[0].mxu0
    %591 = vmatprep.mubr.f32.mxu0 0.0
    %v592 = vand.u32 %v178, 4294901760
    %v593 = vsub.f32 %v178, %v592
    %v594 = vand.u32 %v593, 4294901760
    %595 = vmatmul.mubr.f32.gmra.mrb[0].mxu0 %v594
    %v596 = vpop.f32.mrb[0].mxu0
    %v597 = vadd.f32 %v496, %v596
    %v598 = vpop.f32.mrb[0].mxu0
    %599 = vdwg.mxu0
    %600 = vmatprep.subr.mxu0 0.0
    %v601 = vand.u32 %v135, 4294901760
    %v602 = vsub.f32 %v135, %v601
    %v603 = vand.u32 %v602, 4294901760
    %604 = vmatpush1.msra.mxu0 %v603
    %605 = vmatprep.subr.mxu0 0.0
    %v606 = vand.u32 %v136, 4294901760
    %v607 = vsub.f32 %v136, %v606
    %v608 = vand.u32 %v607, 4294901760
    %609 = vmatpush1.msra.mxu0 %v608
    %610 = vmatprep.subr.mxu0 0.0
    %v611 = vand.u32 %v137, 4294901760
    %v612 = vsub.f32 %v137, %v611
    %v613 = vand.u32 %v612, 4294901760
    %614 = vmatpush1.msra.mxu0 %v613
    %615 = vmatprep.subr.mxu0 0.0
    %v616 = vand.u32 %v138, 4294901760
    %v617 = vsub.f32 %v138, %v616
    %v618 = vand.u32 %v617, 4294901760
    %619 = vmatpush1.msra.mxu0 %v618
    %620 = vmatprep.subr.mxu0 0.0
    %621 = vmatpush1.msra.mxu0 0.0
    %622 = vmatprep.subr.mxu0 0.0
    %623 = vmatpush1.msra.mxu0 0.0
    %624 = vmatprep.subr.mxu0 0.0
    %625 = vmatpush1.msra.mxu0 0.0
    %626 = vmatprep.subr.mxu0 0.0
    %627 = vmatpush1.msra.mxu0 0.0
    %628 = vmatprep.subr.mxu0 0.0
    %629 = vmatpush1.msra.mxu0 0.0
    %630 = vmatprep.subr.mxu0 0.0
    %631 = vmatpush1.msra.mxu0 0.0
    %632 = vmatprep.subr.mxu0 0.0
    %633 = vmatpush1.msra.mxu0 0.0
    %634 = vmatprep.subr.mxu0 0.0
    %635 = vmatpush1.msra.mxu0 0.0
    %636 = vmatprep.subr.mxu0 0.0
    %637 = vmatpush1.msra.mxu0 0.0
    %638 = vmatprep.subr.mxu0 0.0
    %639 = vmatpush1.msra.mxu0 0.0
    %640 = vmatprep.subr.mxu0 0.0
    %641 = vmatpush1.msra.mxu0 0.0
    %642 = vmatprep.subr.mxu0 0.0
    %643 = vmatpush1.msra.mxu0 0.0
    %644 = vmatprep.subr.mxu0 0.0
    %645 = vmatpush1.msra.mxu0 0.0
    %646 = vmatprep.subr.mxu0 0.0
    %647 = vmatpush1.msra.mxu0 0.0
    %648 = vmatprep.subr.mxu0 0.0
    %649 = vmatpush1.msra.mxu0 0.0
    %650 = vmatprep.subr.mxu0 0.0
    %651 = vmatpush1.msra.mxu0 0.0
    %652 = vmatprep.subr.mxu0 0.0
    %653 = vmatpush1.msra.mxu0 0.0
    %654 = vmatprep.subr.mxu0 0.0
    %655 = vmatpush1.msra.mxu0 0.0
    %656 = vmatprep.subr.mxu0 0.0
    %657 = vmatpush1.msra.mxu0 0.0
    %658 = vmatprep.subr.mxu0 0.0
    %659 = vmatpush1.msra.mxu0 0.0
    %660 = vmatprep.subr.mxu0 0.0
    %661 = vmatpush1.msra.mxu0 0.0
    %662 = vmatprep.subr.mxu0 0.0
    %663 = vmatpush1.msra.mxu0 0.0
    %664 = vmatprep.subr.mxu0 0.0
    %665 = vmatpush1.msra.mxu0 0.0
    %666 = vmatprep.subr.mxu0 0.0
    %667 = vmatpush1.msra.mxu0 0.0
    %668 = vmatprep.subr.mxu0 0.0
    %669 = vmatpush1.msra.mxu0 0.0
    %670 = vmatprep.subr.mxu0 0.0
    %671 = vmatpush1.msra.mxu0 0.0
    %672 = vmatprep.subr.mxu0 0.0
    %673 = vmatpush1.msra.mxu0 0.0
    %674 = vmatprep.subr.mxu0 0.0
    %675 = vmatpush1.msra.mxu0 0.0
    %676 = vmatprep.mubr.f32.mxu0 0.0
    %v677 = vand.u32 %v169, 4294901760
    %678 = vmatmul.mubr.f32.gmra.mrb[0].mxu0 %v677
    %v679 = vpop.f32.mrb[0].mxu0
    %v680 = vadd.f32 %v573, %v679
    %v681 = vpop.f32.mrb[0].mxu0
    %682 = vmatprep.mubr.f32.mxu0 0.0
    %v683 = vand.u32 %v172, 4294901760
    %684 = vmatmul.mubr.f32.gmra.mrb[0].mxu0 %v683
    %v685 = vpop.f32.mrb[0].mxu0
    %v686 = vadd.f32 %v581, %v685
    %v687 = vpop.f32.mrb[0].mxu0
    %688 = vmatprep.mubr.f32.mxu0 0.0
    %v689 = vand.u32 %v175, 4294901760
    %690 = vmatmul.mubr.f32.gmra.mrb[0].mxu0 %v689
    %v691 = vpop.f32.mrb[0].mxu0
    %v692 = vadd.f32 %v589, %v691
    %v693 = vpop.f32.mrb[0].mxu0
    %694 = vmatprep.mubr.f32.mxu0 0.0
    %v695 = vand.u32 %v178, 4294901760
    %696 = vmatmul.mubr.f32.gmra.mrb[0].mxu0 %v695
    %v697 = vpop.f32.mrb[0].mxu0
    %v698 = vadd.f32 %v597, %v697
    %v699 = vpop.f32.mrb[0].mxu0
    %700 = vdwg.mxu0
    %701 = vmatprep.subr.mxu0 0.0
    %v702 = vand.u32 %v135, 4294901760
    %703 = vmatpush1.msra.mxu0 %v702
    %704 = vmatprep.subr.mxu0 0.0
    %v705 = vand.u32 %v136, 4294901760
    %706 = vmatpush1.msra.mxu0 %v705
    %707 = vmatprep.subr.mxu0 0.0
    %v708 = vand.u32 %v137, 4294901760
    %709 = vmatpush1.msra.mxu0 %v708
    %710 = vmatprep.subr.mxu0 0.0
    %v711 = vand.u32 %v138, 4294901760
    %712 = vmatpush1.msra.mxu0 %v711
    %713 = vmatprep.subr.mxu0 0.0
    %714 = vmatpush1.msra.mxu0 0.0
    %715 = vmatprep.subr.mxu0 0.0
    %716 = vmatpush1.msra.mxu0 0.0
    %717 = vmatprep.subr.mxu0 0.0
    %718 = vmatpush1.msra.mxu0 0.0
    %719 = vmatprep.subr.mxu0 0.0
    %720 = vmatpush1.msra.mxu0 0.0
    %721 = vmatprep.subr.mxu0 0.0
    %722 = vmatpush1.msra.mxu0 0.0
    %723 = vmatprep.subr.mxu0 0.0
    %724 = vmatpush1.msra.mxu0 0.0
    %725 = vmatprep.subr.mxu0 0.0
    %726 = vmatpush1.msra.mxu0 0.0
    %727 = vmatprep.subr.mxu0 0.0
    %728 = vmatpush1.msra.mxu0 0.0
    %729 = vmatprep.subr.mxu0 0.0
    %730 = vmatpush1.msra.mxu0 0.0
    %731 = vmatprep.subr.mxu0 0.0
    %732 = vmatpush1.msra.mxu0 0.0
    %733 = vmatprep.subr.mxu0 0.0
    %734 = vmatpush1.msra.mxu0 0.0
    %735 = vmatprep.subr.mxu0 0.0
    %736 = vmatpush1.msra.mxu0 0.0
    %737 = vmatprep.subr.mxu0 0.0
    %738 = vmatpush1.msra.mxu0 0.0
    %739 = vmatprep.subr.mxu0 0.0
    %740 = vmatpush1.msra.mxu0 0.0
    %741 = vmatprep.subr.mxu0 0.0
    %742 = vmatpush1.msra.mxu0 0.0
    %743 = vmatprep.subr.mxu0 0.0
    %744 = vmatpush1.msra.mxu0 0.0
    %745 = vmatprep.subr.mxu0 0.0
    %746 = vmatpush1.msra.mxu0 0.0
    %747 = vmatprep.subr.mxu0 0.0
    %748 = vmatpush1.msra.mxu0 0.0
    %749 = vmatprep.subr.mxu0 0.0
    %750 = vmatpush1.msra.mxu0 0.0
    %751 = vmatprep.subr.mxu0 0.0
    %752 = vmatpush1.msra.mxu0 0.0
    %753 = vmatprep.subr.mxu0 0.0
    %754 = vmatpush1.msra.mxu0 0.0
    %755 = vmatprep.subr.mxu0 0.0
    %756 = vmatpush1.msra.mxu0 0.0
    %757 = vmatprep.subr.mxu0 0.0
    %758 = vmatpush1.msra.mxu0 0.0
    %759 = vmatprep.subr.mxu0 0.0
    %760 = vmatpush1.msra.mxu0 0.0
    %761 = vmatprep.subr.mxu0 0.0
    %762 = vmatpush1.msra.mxu0 0.0
    %763 = vmatprep.subr.mxu0 0.0
    %764 = vmatpush1.msra.mxu0 0.0
    %765 = vmatprep.subr.mxu0 0.0
    %766 = vmatpush1.msra.mxu0 0.0
    %767 = vmatprep.subr.mxu0 0.0
    %768 = vmatpush1.msra.mxu0 0.0
    %769 = vmatprep.mubr.f32.mxu0 0.0
    %v770 = vand.u32 %v169, 4294901760
    %771 = vmatmul.mubr.f32.gmra.mrb[0].mxu0 %v770
    %v772 = vpop.f32.mrb[0].mxu0
    %v773 = vadd.f32 %v680, %v772
    %v774 = vpop.f32.mrb[0].mxu0
    %775 = vmatprep.mubr.f32.mxu0 0.0
    %v776 = vand.u32 %v172, 4294901760
    %777 = vmatmul.mubr.f32.gmra.mrb[0].mxu0 %v776
    %v778 = vpop.f32.mrb[0].mxu0
    %v779 = vadd.f32 %v686, %v778
    %v780 = vpop.f32.mrb[0].mxu0
    %781 = vmatprep.mubr.f32.mxu0 0.0
    %v782 = vand.u32 %v175, 4294901760
    %783 = vmatmul.mubr.f32.gmra.mrb[0].mxu0 %v782
    %v784 = vpop.f32.mrb[0].mxu0
    %v785 = vadd.f32 %v692, %v784
    %v786 = vpop.f32.mrb[0].mxu0
    %787 = vmatprep.mubr.f32.mxu0 0.0
    %v788 = vand.u32 %v178, 4294901760
    %789 = vmatmul.mubr.f32.gmra.mrb[0].mxu0 %v788
    %v790 = vpop.f32.mrb[0].mxu0
    %v791 = vadd.f32 %v698, %v790
    %v792 = vpop.f32.mrb[0].mxu0
    %793 = vdwg.mxu0
    %v794 = vmul.f32 %v779, %v779
    %v795 = vmul.f32 %v785, %v785
    %v796 = vmul.f32 %v795, %v785
    %v797 = vmul.f32 %v791, %v791
    %v798 = vmul.f32 %v797, %v791
    %v799 = vmul.f32 %v798, %v791
    %v800 = vld [vmem:[#allocation5 + $0x40] sm:$0xff]
    %v801 = vld [vmem:[#allocation5 + $0x48] sm:$0xff]
    %v802 = vld [vmem:[#allocation5 + $0x50] sm:$0xff]
    %v803 = vld [vmem:[#allocation5 + $0x58] sm:$0xff]
    %v804 = vld [vmem:[#allocation5 + $0xa8] sm:$0xff]
    %v805 = vld [vmem:[#allocation5 + $0xb0] sm:$0xff]
    %v806 = vld [vmem:[#allocation5 + $0xb8] sm:$0xff]
    %v807 = vld [vmem:[#allocation5 + $0xc0] sm:$0xff]
    %809 = vset.pattern.permute.xlu0 0
    %810 = vperm.xlu0 %809, %v804
    %v811 = vpop.permute.xlu0 %810
    %814 = vset.pattern.permute.xlu0 0
    %815 = vperm.xlu0 %814, %v805
    %v816 = vpop.permute.xlu0 %815
    %819 = vset.pattern.permute.xlu0 0
    %820 = vperm.xlu0 %819, %v806
    %v821 = vpop.permute.xlu0 %820
    %824 = vset.pattern.permute.xlu0 0
    %825 = vperm.xlu0 %824, %v807
    %v826 = vpop.permute.xlu0 %825
    %v829 = vsel %vm167, %v800, 0
    %v832 = vsel %vm167, %v801, 0
    %v835 = vsel %vm167, %v802, 0
    %v838 = vsel %vm167, %v803, 0
    %840 = vmatprep.subr.mxu0 0.0
    %v841 = vand.u32 %v773, 4294901760
    %842 = vmatpush1.msra.mxu0 %v841
    %843 = vmatprep.subr.mxu0 0.0
    %v844 = vand.u32 %v794, 4294901760
    %845 = vmatpush1.msra.mxu0 %v844
    %846 = vmatprep.subr.mxu0 0.0
    %v847 = vand.u32 %v796, 4294901760
    %848 = vmatpush1.msra.mxu0 %v847
    %849 = vmatprep.subr.mxu0 0.0
    %v850 = vand.u32 %v799, 4294901760
    %851 = vmatpush1.msra.mxu0 %v850
    %852 = vmatprep.subr.mxu0 0.0
    %853 = vmatpush1.msra.mxu0 0.0
    %854 = vmatprep.subr.mxu0 0.0
    %855 = vmatpush1.msra.mxu0 0.0
    %856 = vmatprep.subr.mxu0 0.0
    %857 = vmatpush1.msra.mxu0 0.0
    %858 = vmatprep.subr.mxu0 0.0
    %859 = vmatpush1.msra.mxu0 0.0
    %860 = vmatprep.subr.mxu0 0.0
    %861 = vmatpush1.msra.mxu0 0.0
    %862 = vmatprep.subr.mxu0 0.0
    %863 = vmatpush1.msra.mxu0 0.0
    %864 = vmatprep.subr.mxu0 0.0
    %865 = vmatpush1.msra.mxu0 0.0
    %866 = vmatprep.subr.mxu0 0.0
    %867 = vmatpush1.msra.mxu0 0.0
    %868 = vmatprep.subr.mxu0 0.0
    %869 = vmatpush1.msra.mxu0 0.0
    %870 = vmatprep.subr.mxu0 0.0
    %871 = vmatpush1.msra.mxu0 0.0
    %872 = vmatprep.subr.mxu0 0.0
    %873 = vmatpush1.msra.mxu0 0.0
    %874 = vmatprep.subr.mxu0 0.0
    %875 = vmatpush1.msra.mxu0 0.0
    %876 = vmatprep.subr.mxu0 0.0
    %877 = vmatpush1.msra.mxu0 0.0
    %878 = vmatprep.subr.mxu0 0.0
    %879 = vmatpush1.msra.mxu0 0.0
    %880 = vmatprep.subr.mxu0 0.0
    %881 = vmatpush1.msra.mxu0 0.0
    %882 = vmatprep.subr.mxu0 0.0
    %883 = vmatpush1.msra.mxu0 0.0
    %884 = vmatprep.subr.mxu0 0.0
    %885 = vmatpush1.msra.mxu0 0.0
    %886 = vmatprep.subr.mxu0 0.0
    %887 = vmatpush1.msra.mxu0 0.0
    %888 = vmatprep.subr.mxu0 0.0
    %889 = vmatpush1.msra.mxu0 0.0
    %890 = vmatprep.subr.mxu0 0.0
    %891 = vmatpush1.msra.mxu0 0.0
    %892 = vmatprep.subr.mxu0 0.0
    %893 = vmatpush1.msra.mxu0 0.0
    %894 = vmatprep.subr.mxu0 0.0
    %895 = vmatpush1.msra.mxu0 0.0
    %896 = vmatprep.subr.mxu0 0.0
    %897 = vmatpush1.msra.mxu0 0.0
    %898 = vmatprep.subr.mxu0 0.0
    %899 = vmatpush1.msra.mxu0 0.0
    %900 = vmatprep.subr.mxu0 0.0
    %901 = vmatpush1.msra.mxu0 0.0
    %902 = vmatprep.subr.mxu0 0.0
    %903 = vmatpush1.msra.mxu0 0.0
    %904 = vmatprep.subr.mxu0 0.0
    %905 = vmatpush1.msra.mxu0 0.0
    %906 = vmatprep.subr.mxu0 0.0
    %907 = vmatpush1.msra.mxu0 0.0
    %908 = vmatprep.mubr.f32.mxu0 0.0
    %v909 = vand.u32 %v829, 4294901760
    %v910 = vsub.f32 %v829, %v909
    %v911 = vand.u32 %v910, 4294901760
    %v912 = vsub.f32 %v910, %v911
    %v913 = vand.u32 %v912, 4294901760
    %914 = vmatmul.mubr.f32.gmra.mrb[0].mxu0 %v913
    %v915 = vpop.f32.mrb[0].mxu0
    %v916 = vadd.f32 %v811, %v915
    %v917 = vpop.f32.mrb[0].mxu0
    %918 = vmatprep.mubr.f32.mxu0 0.0
    %v919 = vand.u32 %v832, 4294901760
    %v920 = vsub.f32 %v832, %v919
    %v921 = vand.u32 %v920, 4294901760
    %v922 = vsub.f32 %v920, %v921
    %v923 = vand.u32 %v922, 4294901760
    %924 = vmatmul.mubr.f32.gmra.mrb[0].mxu0 %v923
    %v925 = vpop.f32.mrb[0].mxu0
    %v926 = vadd.f32 %v816, %v925
    %v927 = vpop.f32.mrb[0].mxu0
    %928 = vmatprep.mubr.f32.mxu0 0.0
    %v929 = vand.u32 %v835, 4294901760
    %v930 = vsub.f32 %v835, %v929
    %v931 = vand.u32 %v930, 4294901760
    %v932 = vsub.f32 %v930, %v931
    %v933 = vand.u32 %v932, 4294901760
    %934 = vmatmul.mubr.f32.gmra.mrb[0].mxu0 %v933
    %v935 = vpop.f32.mrb[0].mxu0
    %v936 = vadd.f32 %v821, %v935
    %v937 = vpop.f32.mrb[0].mxu0
    %938 = vmatprep.mubr.f32.mxu0 0.0
    %v939 = vand.u32 %v838, 4294901760
    %v940 = vsub.f32 %v838, %v939
    %v941 = vand.u32 %v940, 4294901760
    %v942 = vsub.f32 %v940, %v941
    %v943 = vand.u32 %v942, 4294901760
    %944 = vmatmul.mubr.f32.gmra.mrb[0].mxu0 %v943
    %v945 = vpop.f32.mrb[0].mxu0
    %v946 = vadd.f32 %v826, %v945
    %v947 = vpop.f32.mrb[0].mxu0
    %948 = vdwg.mxu0
    %949 = vmatprep.subr.mxu0 0.0
    %v950 = vand.u32 %v773, 4294901760
    %v951 = vsub.f32 %v773, %v950
    %v952 = vand.u32 %v951, 4294901760
    %v953 = vsub.f32 %v951, %v952
    %v954 = vand.u32 %v953, 4294901760
    %955 = vmatpush1.msra.mxu0 %v954
    %956 = vmatprep.subr.mxu0 0.0
    %v957 = vand.u32 %v794, 4294901760
    %v958 = vsub.f32 %v794, %v957
    %v959 = vand.u32 %v958, 4294901760
    %v960 = vsub.f32 %v958, %v959
    %v961 = vand.u32 %v960, 4294901760
    %962 = vmatpush1.msra.mxu0 %v961
    %963 = vmatprep.subr.mxu0 0.0
    %v964 = vand.u32 %v796, 4294901760
    %v965 = vsub.f32 %v796, %v964
    %v966 = vand.u32 %v965, 4294901760
    %v967 = vsub.f32 %v965, %v966
    %v968 = vand.u32 %v967, 4294901760
    %969 = vmatpush1.msra.mxu0 %v968
    %970 = vmatprep.subr.mxu0 0.0
    %v971 = vand.u32 %v799, 4294901760
    %v972 = vsub.f32 %v799, %v971
    %v973 = vand.u32 %v972, 4294901760
    %v974 = vsub.f32 %v972, %v973
    %v975 = vand.u32 %v974, 4294901760
    %976 = vmatpush1.msra.mxu0 %v975
    %977 = vmatprep.subr.mxu0 0.0
    %978 = vmatpush1.msra.mxu0 0.0
    %979 = vmatprep.subr.mxu0 0.0
    %980 = vmatpush1.msra.mxu0 0.0
    %981 = vmatprep.subr.mxu0 0.0
    %982 = vmatpush1.msra.mxu0 0.0
    %983 = vmatprep.subr.mxu0 0.0
    %984 = vmatpush1.msra.mxu0 0.0
    %985 = vmatprep.subr.mxu0 0.0
    %986 = vmatpush1.msra.mxu0 0.0
    %987 = vmatprep.subr.mxu0 0.0
    %988 = vmatpush1.msra.mxu0 0.0
    %989 = vmatprep.subr.mxu0 0.0
    %990 = vmatpush1.msra.mxu0 0.0
    %991 = vmatprep.subr.mxu0 0.0
    %992 = vmatpush1.msra.mxu0 0.0
    %993 = vmatprep.subr.mxu0 0.0
    %994 = vmatpush1.msra.mxu0 0.0
    %995 = vmatprep.subr.mxu0 0.0
    %996 = vmatpush1.msra.mxu0 0.0
    %997 = vmatprep.subr.mxu0 0.0
    %998 = vmatpush1.msra.mxu0 0.0
    %999 = vmatprep.subr.mxu0 0.0
    %1000 = vmatpush1.msra.mxu0 0.0
    %1001 = vmatprep.subr.mxu0 0.0
    %1002 = vmatpush1.msra.mxu0 0.0
    %1003 = vmatprep.subr.mxu0 0.0
    %1004 = vmatpush1.msra.mxu0 0.0
    %1005 = vmatprep.subr.mxu0 0.0
    %1006 = vmatpush1.msra.mxu0 0.0
    %1007 = vmatprep.subr.mxu0 0.0
    %1008 = vmatpush1.msra.mxu0 0.0
    %1009 = vmatprep.subr.mxu0 0.0
    %1010 = vmatpush1.msra.mxu0 0.0
    %1011 = vmatprep.subr.mxu0 0.0
    %1012 = vmatpush1.msra.mxu0 0.0
    %1013 = vmatprep.subr.mxu0 0.0
    %1014 = vmatpush1.msra.mxu0 0.0
    %1015 = vmatprep.subr.mxu0 0.0
    %1016 = vmatpush1.msra.mxu0 0.0
    %1017 = vmatprep.subr.mxu0 0.0
    %1018 = vmatpush1.msra.mxu0 0.0
    %1019 = vmatprep.subr.mxu0 0.0
    %1020 = vmatpush1.msra.mxu0 0.0
    %1021 = vmatprep.subr.mxu0 0.0
    %1022 = vmatpush1.msra.mxu0 0.0
    %1023 = vmatprep.subr.mxu0 0.0
    %1024 = vmatpush1.msra.mxu0 0.0
    %1025 = vmatprep.subr.mxu0 0.0
    %1026 = vmatpush1.msra.mxu0 0.0
    %1027 = vmatprep.subr.mxu0 0.0
    %1028 = vmatpush1.msra.mxu0 0.0
    %1029 = vmatprep.subr.mxu0 0.0
    %1030 = vmatpush1.msra.mxu0 0.0
    %1031 = vmatprep.subr.mxu0 0.0
    %1032 = vmatpush1.msra.mxu0 0.0
    %1033 = vmatprep.mubr.f32.mxu0 0.0
    %v1034 = vand.u32 %v829, 4294901760
    %1035 = vmatmul.mubr.f32.gmra.mrb[0].mxu0 %v1034
    %v1036 = vpop.f32.mrb[0].mxu0
    %v1037 = vadd.f32 %v916, %v1036
    %v1038 = vpop.f32.mrb[0].mxu0
    %1039 = vmatprep.mubr.f32.mxu0 0.0
    %v1040 = vand.u32 %v832, 4294901760
    %1041 = vmatmul.mubr.f32.gmra.mrb[0].mxu0 %v1040
    %v1042 = vpop.f32.mrb[0].mxu0
    %v1043 = vadd.f32 %v926, %v1042
    %v1044 = vpop.f32.mrb[0].mxu0
    %1045 = vmatprep.mubr.f32.mxu0 0.0
    %v1046 = vand.u32 %v835, 4294901760
    %1047 = vmatmul.mubr.f32.gmra.mrb[0].mxu0 %v1046
    %v1048 = vpop.f32.mrb[0].mxu0
    %v1049 = vadd.f32 %v936, %v1048
    %v1050 = vpop.f32.mrb[0].mxu0
    %1051 = vmatprep.mubr.f32.mxu0 0.0
    %v1052 = vand.u32 %v838, 4294901760
    %1053 = vmatmul.mubr.f32.gmra.mrb[0].mxu0 %v1052
    %v1054 = vpop.f32.mrb[0].mxu0
    %v1055 = vadd.f32 %v946, %v1054
    %v1056 = vpop.f32.mrb[0].mxu0
    %1057 = vdwg.mxu0
    %1058 = vmatprep.subr.mxu0 0.0
    %v1059 = vand.u32 %v773, 4294901760
    %v1060 = vsub.f32 %v773, %v1059
    %1061 = vmatpush1.msra.mxu0 %v1060
    %1062 = vmatprep.subr.mxu0 0.0
    %v1063 = vand.u32 %v794, 4294901760
    %v1064 = vsub.f32 %v794, %v1063
    %1065 = vmatpush1.msra.mxu0 %v1064
    %1066 = vmatprep.subr.mxu0 0.0
    %v1067 = vand.u32 %v796, 4294901760
    %v1068 = vsub.f32 %v796, %v1067
    %1069 = vmatpush1.msra.mxu0 %v1068
    %1070 = vmatprep.subr.mxu0 0.0
    %v1071 = vand.u32 %v799, 4294901760
    %v1072 = vsub.f32 %v799, %v1071
    %1073 = vmatpush1.msra.mxu0 %v1072
    %1074 = vmatprep.subr.mxu0 0.0
    %1075 = vmatpush1.msra.mxu0 0.0
    %1076 = vmatprep.subr.mxu0 0.0
    %1077 = vmatpush1.msra.mxu0 0.0
    %1078 = vmatprep.subr.mxu0 0.0
    %1079 = vmatpush1.msra.mxu0 0.0
    %1080 = vmatprep.subr.mxu0 0.0
    %1081 = vmatpush1.msra.mxu0 0.0
    %1082 = vmatprep.subr.mxu0 0.0
    %1083 = vmatpush1.msra.mxu0 0.0
    %1084 = vmatprep.subr.mxu0 0.0
    %1085 = vmatpush1.msra.mxu0 0.0
    %1086 = vmatprep.subr.mxu0 0.0
    %1087 = vmatpush1.msra.mxu0 0.0
    %1088 = vmatprep.subr.mxu0 0.0
    %1089 = vmatpush1.msra.mxu0 0.0
    %1090 = vmatprep.subr.mxu0 0.0
    %1091 = vmatpush1.msra.mxu0 0.0
    %1092 = vmatprep.subr.mxu0 0.0
    %1093 = vmatpush1.msra.mxu0 0.0
    %1094 = vmatprep.subr.mxu0 0.0
    %1095 = vmatpush1.msra.mxu0 0.0
    %1096 = vmatprep.subr.mxu0 0.0
    %1097 = vmatpush1.msra.mxu0 0.0
    %1098 = vmatprep.subr.mxu0 0.0
    %1099 = vmatpush1.msra.mxu0 0.0
    %1100 = vmatprep.subr.mxu0 0.0
    %1101 = vmatpush1.msra.mxu0 0.0
    %1102 = vmatprep.subr.mxu0 0.0
    %1103 = vmatpush1.msra.mxu0 0.0
    %1104 = vmatprep.subr.mxu0 0.0
    %1105 = vmatpush1.msra.mxu0 0.0
    %1106 = vmatprep.subr.mxu0 0.0
    %1107 = vmatpush1.msra.mxu0 0.0
    %1108 = vmatprep.subr.mxu0 0.0
    %1109 = vmatpush1.msra.mxu0 0.0
    %1110 = vmatprep.subr.mxu0 0.0
    %1111 = vmatpush1.msra.mxu0 0.0
    %1112 = vmatprep.subr.mxu0 0.0
    %1113 = vmatpush1.msra.mxu0 0.0
    %1114 = vmatprep.subr.mxu0 0.0
    %1115 = vmatpush1.msra.mxu0 0.0
    %1116 = vmatprep.subr.mxu0 0.0
    %1117 = vmatpush1.msra.mxu0 0.0
    %1118 = vmatprep.subr.mxu0 0.0
    %1119 = vmatpush1.msra.mxu0 0.0
    %1120 = vmatprep.subr.mxu0 0.0
    %1121 = vmatpush1.msra.mxu0 0.0
    %1122 = vmatprep.subr.mxu0 0.0
    %1123 = vmatpush1.msra.mxu0 0.0
    %1124 = vmatprep.subr.mxu0 0.0
    %1125 = vmatpush1.msra.mxu0 0.0
    %1126 = vmatprep.subr.mxu0 0.0
    %1127 = vmatpush1.msra.mxu0 0.0
    %1128 = vmatprep.subr.mxu0 0.0
    %1129 = vmatpush1.msra.mxu0 0.0
    %1130 = vmatprep.mubr.f32.mxu0 0.0
    %v1131 = vand.u32 %v829, 4294901760
    %v1132 = vsub.f32 %v829, %v1131
    %1133 = vmatmul.mubr.f32.gmra.mrb[0].mxu0 %v1132
    %v1134 = vpop.f32.mrb[0].mxu0
    %v1135 = vadd.f32 %v1037, %v1134
    %v1136 = vpop.f32.mrb[0].mxu0
    %1137 = vmatprep.mubr.f32.mxu0 0.0
    %v1138 = vand.u32 %v832, 4294901760
    %v1139 = vsub.f32 %v832, %v1138
    %1140 = vmatmul.mubr.f32.gmra.mrb[0].mxu0 %v1139
    %v1141 = vpop.f32.mrb[0].mxu0
    %v1142 = vadd.f32 %v1043, %v1141
    %v1143 = vpop.f32.mrb[0].mxu0
    %1144 = vmatprep.mubr.f32.mxu0 0.0
    %v1145 = vand.u32 %v835, 4294901760
    %v1146 = vsub.f32 %v835, %v1145
    %1147 = vmatmul.mubr.f32.gmra.mrb[0].mxu0 %v1146
    %v1148 = vpop.f32.mrb[0].mxu0
    %v1149 = vadd.f32 %v1049, %v1148
    %v1150 = vpop.f32.mrb[0].mxu0
    %1151 = vmatprep.mubr.f32.mxu0 0.0
    %v1152 = vand.u32 %v838, 4294901760
    %v1153 = vsub.f32 %v838, %v1152
    %1154 = vmatmul.mubr.f32.gmra.mrb[0].mxu0 %v1153
    %v1155 = vpop.f32.mrb[0].mxu0
    %v1156 = vadd.f32 %v1055, %v1155
    %v1157 = vpop.f32.mrb[0].mxu0
    %1158 = vdwg.mxu0
    %1159 = vmatprep.subr.mxu0 0.0
    %v1160 = vand.u32 %v773, 4294901760
    %1161 = vmatpush1.msra.mxu0 %v1160
    %1162 = vmatprep.subr.mxu0 0.0
    %v1163 = vand.u32 %v794, 4294901760
    %1164 = vmatpush1.msra.mxu0 %v1163
    %1165 = vmatprep.subr.mxu0 0.0
    %v1166 = vand.u32 %v796, 4294901760
    %1167 = vmatpush1.msra.mxu0 %v1166
    %1168 = vmatprep.subr.mxu0 0.0
    %v1169 = vand.u32 %v799, 4294901760
    %1170 = vmatpush1.msra.mxu0 %v1169
    %1171 = vmatprep.subr.mxu0 0.0
    %1172 = vmatpush1.msra.mxu0 0.0
    %1173 = vmatprep.subr.mxu0 0.0
    %1174 = vmatpush1.msra.mxu0 0.0
    %1175 = vmatprep.subr.mxu0 0.0
    %1176 = vmatpush1.msra.mxu0 0.0
    %1177 = vmatprep.subr.mxu0 0.0
    %1178 = vmatpush1.msra.mxu0 0.0
    %1179 = vmatprep.subr.mxu0 0.0
    %1180 = vmatpush1.msra.mxu0 0.0
    %1181 = vmatprep.subr.mxu0 0.0
    %1182 = vmatpush1.msra.mxu0 0.0
    %1183 = vmatprep.subr.mxu0 0.0
    %1184 = vmatpush1.msra.mxu0 0.0
    %1185 = vmatprep.subr.mxu0 0.0
    %1186 = vmatpush1.msra.mxu0 0.0
    %1187 = vmatprep.subr.mxu0 0.0
    %1188 = vmatpush1.msra.mxu0 0.0
    %1189 = vmatprep.subr.mxu0 0.0
    %1190 = vmatpush1.msra.mxu0 0.0
    %1191 = vmatprep.subr.mxu0 0.0
    %1192 = vmatpush1.msra.mxu0 0.0
    %1193 = vmatprep.subr.mxu0 0.0
    %1194 = vmatpush1.msra.mxu0 0.0
    %1195 = vmatprep.subr.mxu0 0.0
    %1196 = vmatpush1.msra.mxu0 0.0
    %1197 = vmatprep.subr.mxu0 0.0
    %1198 = vmatpush1.msra.mxu0 0.0
    %1199 = vmatprep.subr.mxu0 0.0
    %1200 = vmatpush1.msra.mxu0 0.0
    %1201 = vmatprep.subr.mxu0 0.0
    %1202 = vmatpush1.msra.mxu0 0.0
    %1203 = vmatprep.subr.mxu0 0.0
    %1204 = vmatpush1.msra.mxu0 0.0
    %1205 = vmatprep.subr.mxu0 0.0
    %1206 = vmatpush1.msra.mxu0 0.0
    %1207 = vmatprep.subr.mxu0 0.0
    %1208 = vmatpush1.msra.mxu0 0.0
    %1209 = vmatprep.subr.mxu0 0.0
    %1210 = vmatpush1.msra.mxu0 0.0
    %1211 = vmatprep.subr.mxu0 0.0
    %1212 = vmatpush1.msra.mxu0 0.0
    %1213 = vmatprep.subr.mxu0 0.0
    %1214 = vmatpush1.msra.mxu0 0.0
    %1215 = vmatprep.subr.mxu0 0.0
    %1216 = vmatpush1.msra.mxu0 0.0
    %1217 = vmatprep.subr.mxu0 0.0
    %1218 = vmatpush1.msra.mxu0 0.0
    %1219 = vmatprep.subr.mxu0 0.0
    %1220 = vmatpush1.msra.mxu0 0.0
    %1221 = vmatprep.subr.mxu0 0.0
    %1222 = vmatpush1.msra.mxu0 0.0
    %1223 = vmatprep.subr.mxu0 0.0
    %1224 = vmatpush1.msra.mxu0 0.0
    %1225 = vmatprep.subr.mxu0 0.0
    %1226 = vmatpush1.msra.mxu0 0.0
    %1227 = vmatprep.mubr.f32.mxu0 0.0
    %v1228 = vand.u32 %v829, 4294901760
    %v1229 = vsub.f32 %v829, %v1228
    %v1230 = vand.u32 %v1229, 4294901760
    %1231 = vmatmul.mubr.f32.gmra.mrb[0].mxu0 %v1230
    %v1232 = vpop.f32.mrb[0].mxu0
    %v1233 = vadd.f32 %v1135, %v1232
    %v1234 = vpop.f32.mrb[0].mxu0
    %1235 = vmatprep.mubr.f32.mxu0 0.0
    %v1236 = vand.u32 %v832, 4294901760
    %v1237 = vsub.f32 %v832, %v1236
    %v1238 = vand.u32 %v1237, 4294901760
    %1239 = vmatmul.mubr.f32.gmra.mrb[0].mxu0 %v1238
    %v1240 = vpop.f32.mrb[0].mxu0
    %v1241 = vadd.f32 %v1142, %v1240
    %v1242 = vpop.f32.mrb[0].mxu0
    %1243 = vmatprep.mubr.f32.mxu0 0.0
    %v1244 = vand.u32 %v835, 4294901760
    %v1245 = vsub.f32 %v835, %v1244
    %v1246 = vand.u32 %v1245, 4294901760
    %1247 = vmatmul.mubr.f32.gmra.mrb[0].mxu0 %v1246
    %v1248 = vpop.f32.mrb[0].mxu0
    %v1249 = vadd.f32 %v1149, %v1248
    %v1250 = vpop.f32.mrb[0].mxu0
    %1251 = vmatprep.mubr.f32.mxu0 0.0
    %v1252 = vand.u32 %v838, 4294901760
    %v1253 = vsub.f32 %v838, %v1252
    %v1254 = vand.u32 %v1253, 4294901760
    %1255 = vmatmul.mubr.f32.gmra.mrb[0].mxu0 %v1254
    %v1256 = vpop.f32.mrb[0].mxu0
    %v1257 = vadd.f32 %v1156, %v1256
    %v1258 = vpop.f32.mrb[0].mxu0
    %1259 = vdwg.mxu0
    %1260 = vmatprep.subr.mxu0 0.0
    %v1261 = vand.u32 %v773, 4294901760
    %v1262 = vsub.f32 %v773, %v1261
    %v1263 = vand.u32 %v1262, 4294901760
    %1264 = vmatpush1.msra.mxu0 %v1263
    %1265 = vmatprep.subr.mxu0 0.0
    %v1266 = vand.u32 %v794, 4294901760
    %v1267 = vsub.f32 %v794, %v1266
    %v1268 = vand.u32 %v1267, 4294901760
    %1269 = vmatpush1.msra.mxu0 %v1268
    %1270 = vmatprep.subr.mxu0 0.0
    %v1271 = vand.u32 %v796, 4294901760
    %v1272 = vsub.f32 %v796, %v1271
    %v1273 = vand.u32 %v1272, 4294901760
    %1274 = vmatpush1.msra.mxu0 %v1273
    %1275 = vmatprep.subr.mxu0 0.0
    %v1276 = vand.u32 %v799, 4294901760
    %v1277 = vsub.f32 %v799, %v1276
    %v1278 = vand.u32 %v1277, 4294901760
    %1279 = vmatpush1.msra.mxu0 %v1278
    %1280 = vmatprep.subr.mxu0 0.0
    %1281 = vmatpush1.msra.mxu0 0.0
    %1282 = vmatprep.subr.mxu0 0.0
    %1283 = vmatpush1.msra.mxu0 0.0
    %1284 = vmatprep.subr.mxu0 0.0
    %1285 = vmatpush1.msra.mxu0 0.0
    %1286 = vmatprep.subr.mxu0 0.0
    %1287 = vmatpush1.msra.mxu0 0.0
    %1288 = vmatprep.subr.mxu0 0.0
    %1289 = vmatpush1.msra.mxu0 0.0
    %1290 = vmatprep.subr.mxu0 0.0
    %1291 = vmatpush1.msra.mxu0 0.0
    %1292 = vmatprep.subr.mxu0 0.0
    %1293 = vmatpush1.msra.mxu0 0.0
    %1294 = vmatprep.subr.mxu0 0.0
    %1295 = vmatpush1.msra.mxu0 0.0
    %1296 = vmatprep.subr.mxu0 0.0
    %1297 = vmatpush1.msra.mxu0 0.0
    %1298 = vmatprep.subr.mxu0 0.0
    %1299 = vmatpush1.msra.mxu0 0.0
    %1300 = vmatprep.subr.mxu0 0.0
    %1301 = vmatpush1.msra.mxu0 0.0
    %1302 = vmatprep.subr.mxu0 0.0
    %1303 = vmatpush1.msra.mxu0 0.0
    %1304 = vmatprep.subr.mxu0 0.0
    %1305 = vmatpush1.msra.mxu0 0.0
    %1306 = vmatprep.subr.mxu0 0.0
    %1307 = vmatpush1.msra.mxu0 0.0
    %1308 = vmatprep.subr.mxu0 0.0
    %1309 = vmatpush1.msra.mxu0 0.0
    %1310 = vmatprep.subr.mxu0 0.0
    %1311 = vmatpush1.msra.mxu0 0.0
    %1312 = vmatprep.subr.mxu0 0.0
    %1313 = vmatpush1.msra.mxu0 0.0
    %1314 = vmatprep.subr.mxu0 0.0
    %1315 = vmatpush1.msra.mxu0 0.0
    %1316 = vmatprep.subr.mxu0 0.0
    %1317 = vmatpush1.msra.mxu0 0.0
    %1318 = vmatprep.subr.mxu0 0.0
    %1319 = vmatpush1.msra.mxu0 0.0
    %1320 = vmatprep.subr.mxu0 0.0
    %1321 = vmatpush1.msra.mxu0 0.0
    %1322 = vmatprep.subr.mxu0 0.0
    %1323 = vmatpush1.msra.mxu0 0.0
    %1324 = vmatprep.subr.mxu0 0.0
    %1325 = vmatpush1.msra.mxu0 0.0
    %1326 = vmatprep.subr.mxu0 0.0
    %1327 = vmatpush1.msra.mxu0 0.0
    %1328 = vmatprep.subr.mxu0 0.0
    %1329 = vmatpush1.msra.mxu0 0.0
    %1330 = vmatprep.subr.mxu0 0.0
    %1331 = vmatpush1.msra.mxu0 0.0
    %1332 = vmatprep.subr.mxu0 0.0
    %1333 = vmatpush1.msra.mxu0 0.0
    %1334 = vmatprep.subr.mxu0 0.0
    %1335 = vmatpush1.msra.mxu0 0.0
    %1336 = vmatprep.mubr.f32.mxu0 0.0
    %v1337 = vand.u32 %v829, 4294901760
    %1338 = vmatmul.mubr.f32.gmra.mrb[0].mxu0 %v1337
    %v1339 = vpop.f32.mrb[0].mxu0
    %v1340 = vadd.f32 %v1233, %v1339
    %v1341 = vpop.f32.mrb[0].mxu0
    %1342 = vmatprep.mubr.f32.mxu0 0.0
    %v1343 = vand.u32 %v832, 4294901760
    %1344 = vmatmul.mubr.f32.gmra.mrb[0].mxu0 %v1343
    %v1345 = vpop.f32.mrb[0].mxu0
    %v1346 = vadd.f32 %v1241, %v1345
    %v1347 = vpop.f32.mrb[0].mxu0
    %1348 = vmatprep.mubr.f32.mxu0 0.0
    %v1349 = vand.u32 %v835, 4294901760
    %1350 = vmatmul.mubr.f32.gmra.mrb[0].mxu0 %v1349
    %v1351 = vpop.f32.mrb[0].mxu0
    %v1352 = vadd.f32 %v1249, %v1351
    %v1353 = vpop.f32.mrb[0].mxu0
    %1354 = vmatprep.mubr.f32.mxu0 0.0
    %v1355 = vand.u32 %v838, 4294901760
    %1356 = vmatmul.mubr.f32.gmra.mrb[0].mxu0 %v1355
    %v1357 = vpop.f32.mrb[0].mxu0
    %v1358 = vadd.f32 %v1257, %v1357
    %v1359 = vpop.f32.mrb[0].mxu0
    %1360 = vdwg.mxu0
    %1361 = vmatprep.subr.mxu0 0.0
    %v1362 = vand.u32 %v773, 4294901760
    %1363 = vmatpush1.msra.mxu0 %v1362
    %1364 = vmatprep.subr.mxu0 0.0
    %v1365 = vand.u32 %v794, 4294901760
    %1366 = vmatpush1.msra.mxu0 %v1365
    %1367 = vmatprep.subr.mxu0 0.0
    %v1368 = vand.u32 %v796, 4294901760
    %1369 = vmatpush1.msra.mxu0 %v1368
    %1370 = vmatprep.subr.mxu0 0.0
    %v1371 = vand.u32 %v799, 4294901760
    %1372 = vmatpush1.msra.mxu0 %v1371
    %1373 = vmatprep.subr.mxu0 0.0
    %1374 = vmatpush1.msra.mxu0 0.0
    %1375 = vmatprep.subr.mxu0 0.0
    %1376 = vmatpush1.msra.mxu0 0.0
    %1377 = vmatprep.subr.mxu0 0.0
    %1378 = vmatpush1.msra.mxu0 0.0
    %1379 = vmatprep.subr.mxu0 0.0
    %1380 = vmatpush1.msra.mxu0 0.0
    %1381 = vmatprep.subr.mxu0 0.0
    %1382 = vmatpush1.msra.mxu0 0.0
    %1383 = vmatprep.subr.mxu0 0.0
    %1384 = vmatpush1.msra.mxu0 0.0
    %1385 = vmatprep.subr.mxu0 0.0
    %1386 = vmatpush1.msra.mxu0 0.0
    %1387 = vmatprep.subr.mxu0 0.0
    %1388 = vmatpush1.msra.mxu0 0.0
    %1389 = vmatprep.subr.mxu0 0.0
    %1390 = vmatpush1.msra.mxu0 0.0
    %1391 = vmatprep.subr.mxu0 0.0
    %1392 = vmatpush1.msra.mxu0 0.0
    %1393 = vmatprep.subr.mxu0 0.0
    %1394 = vmatpush1.msra.mxu0 0.0
    %1395 = vmatprep.subr.mxu0 0.0
    %1396 = vmatpush1.msra.mxu0 0.0
    %1397 = vmatprep.subr.mxu0 0.0
    %1398 = vmatpush1.msra.mxu0 0.0
    %1399 = vmatprep.subr.mxu0 0.0
    %1400 = vmatpush1.msra.mxu0 0.0
    %1401 = vmatprep.subr.mxu0 0.0
    %1402 = vmatpush1.msra.mxu0 0.0
    %1403 = vmatprep.subr.mxu0 0.0
    %1404 = vmatpush1.msra.mxu0 0.0
    %1405 = vmatprep.subr.mxu0 0.0
    %1406 = vmatpush1.msra.mxu0 0.0
    %1407 = vmatprep.subr.mxu0 0.0
    %1408 = vmatpush1.msra.mxu0 0.0
    %1409 = vmatprep.subr.mxu0 0.0
    %1410 = vmatpush1.msra.mxu0 0.0
    %1411 = vmatprep.subr.mxu0 0.0
    %1412 = vmatpush1.msra.mxu0 0.0
    %1413 = vmatprep.subr.mxu0 0.0
    %1414 = vmatpush1.msra.mxu0 0.0
    %1415 = vmatprep.subr.mxu0 0.0
    %1416 = vmatpush1.msra.mxu0 0.0
    %1417 = vmatprep.subr.mxu0 0.0
    %1418 = vmatpush1.msra.mxu0 0.0
    %1419 = vmatprep.subr.mxu0 0.0
    %1420 = vmatpush1.msra.mxu0 0.0
    %1421 = vmatprep.subr.mxu0 0.0
    %1422 = vmatpush1.msra.mxu0 0.0
    %1423 = vmatprep.subr.mxu0 0.0
    %1424 = vmatpush1.msra.mxu0 0.0
    %1425 = vmatprep.subr.mxu0 0.0
    %1426 = vmatpush1.msra.mxu0 0.0
    %1427 = vmatprep.subr.mxu0 0.0
    %1428 = vmatpush1.msra.mxu0 0.0
    %1429 = vmatprep.mubr.f32.mxu0 0.0
    %v1430 = vand.u32 %v829, 4294901760
    %1431 = vmatmul.mubr.f32.gmra.mrb[0].mxu0 %v1430
    %v1432 = vpop.f32.mrb[0].mxu0
    %v1433 = vadd.f32 %v1340, %v1432
    %v1434 = vpop.f32.mrb[0].mxu0
    %1435 = vmatprep.mubr.f32.mxu0 0.0
    %v1436 = vand.u32 %v832, 4294901760
    %1437 = vmatmul.mubr.f32.gmra.mrb[0].mxu0 %v1436
    %v1438 = vpop.f32.mrb[0].mxu0
    %v1439 = vadd.f32 %v1346, %v1438
    %v1440 = vpop.f32.mrb[0].mxu0
    %1441 = vmatprep.mubr.f32.mxu0 0.0
    %v1442 = vand.u32 %v835, 4294901760
    %1443 = vmatmul.mubr.f32.gmra.mrb[0].mxu0 %v1442
    %v1444 = vpop.f32.mrb[0].mxu0
    %v1445 = vadd.f32 %v1352, %v1444
    %v1446 = vpop.f32.mrb[0].mxu0
    %1447 = vmatprep.mubr.f32.mxu0 0.0
    %v1448 = vand.u32 %v838, 4294901760
    %1449 = vmatmul.mubr.f32.gmra.mrb[0].mxu0 %v1448
    %v1450 = vpop.f32.mrb[0].mxu0
    %v1451 = vadd.f32 %v1358, %v1450
    %v1452 = vpop.f32.mrb[0].mxu0
    %1453 = vdwg.mxu0
    %vm1454 = vcmp.gt.f32.partialorder %v1433, 0.0
    %vm1455 = vcmp.gt.f32.partialorder %v1439, 0.0
    %vm1456 = vcmp.gt.f32.partialorder %v1445, 0.0
    %vm1457 = vcmp.gt.f32.partialorder %v1451, 0.0
    %v1458 = vmul.f32 %v1433, 0.01
    %v1459 = vmul.f32 %v1439, 0.01
    %v1460 = vmul.f32 %v1445, 0.01
    %v1461 = vmul.f32 %v1451, 0.01
    %v1462 = vsel %vm1454, %v1433, %v1458
    %v1463 = vsel %vm1455, %v1439, %v1459
    %v1464 = vsel %vm1456, %v1445, %v1460
    %v1465 = vsel %vm1457, %v1451, %v1461
    %v1466 = vld [vmem:[#allocation5 + $0x60] sm:$0xff]
    %v1467 = vld [vmem:[#allocation5 + $0xc8] sm:$0x1]
    %v1469 = vsel %vm167, %v1466, 0
    %1471 = vmatprep.subr.mxu0 0.0
    %v1472 = vand.u32 %v1462, 4294901760
    %1473 = vmatpush1.msra.mxu0 %v1472
    %1474 = vmatprep.subr.mxu0 0.0
    %v1475 = vand.u32 %v1463, 4294901760
    %1476 = vmatpush1.msra.mxu0 %v1475
    %1477 = vmatprep.subr.mxu0 0.0
    %v1478 = vand.u32 %v1464, 4294901760
    %1479 = vmatpush1.msra.mxu0 %v1478
    %1480 = vmatprep.subr.mxu0 0.0
    %v1481 = vand.u32 %v1465, 4294901760
    %1482 = vmatpush1.msra.mxu0 %v1481
    %1483 = vmatprep.subr.mxu0 0.0
    %1484 = vmatpush1.msra.mxu0 0.0
    %1485 = vmatprep.subr.mxu0 0.0
    %1486 = vmatpush1.msra.mxu0 0.0
    %1487 = vmatprep.subr.mxu0 0.0
    %1488 = vmatpush1.msra.mxu0 0.0
    %1489 = vmatprep.subr.mxu0 0.0
    %1490 = vmatpush1.msra.mxu0 0.0
    %1491 = vmatprep.subr.mxu0 0.0
    %1492 = vmatpush1.msra.mxu0 0.0
    %1493 = vmatprep.subr.mxu0 0.0
    %1494 = vmatpush1.msra.mxu0 0.0
    %1495 = vmatprep.subr.mxu0 0.0
    %1496 = vmatpush1.msra.mxu0 0.0
    %1497 = vmatprep.subr.mxu0 0.0
    %1498 = vmatpush1.msra.mxu0 0.0
    %1499 = vmatprep.subr.mxu0 0.0
    %1500 = vmatpush1.msra.mxu0 0.0
    %1501 = vmatprep.subr.mxu0 0.0
    %1502 = vmatpush1.msra.mxu0 0.0
    %1503 = vmatprep.subr.mxu0 0.0
    %1504 = vmatpush1.msra.mxu0 0.0
    %1505 = vmatprep.subr.mxu0 0.0
    %1506 = vmatpush1.msra.mxu0 0.0
    %1507 = vmatprep.subr.mxu0 0.0
    %1508 = vmatpush1.msra.mxu0 0.0
    %1509 = vmatprep.subr.mxu0 0.0
    %1510 = vmatpush1.msra.mxu0 0.0
    %1511 = vmatprep.subr.mxu0 0.0
    %1512 = vmatpush1.msra.mxu0 0.0
    %1513 = vmatprep.subr.mxu0 0.0
    %1514 = vmatpush1.msra.mxu0 0.0
    %1515 = vmatprep.subr.mxu0 0.0
    %1516 = vmatpush1.msra.mxu0 0.0
    %1517 = vmatprep.subr.mxu0 0.0
    %1518 = vmatpush1.msra.mxu0 0.0
    %1519 = vmatprep.subr.mxu0 0.0
    %1520 = vmatpush1.msra.mxu0 0.0
    %1521 = vmatprep.subr.mxu0 0.0
    %1522 = vmatpush1.msra.mxu0 0.0
    %1523 = vmatprep.subr.mxu0 0.0
    %1524 = vmatpush1.msra.mxu0 0.0
    %1525 = vmatprep.subr.mxu0 0.0
    %1526 = vmatpush1.msra.mxu0 0.0
    %1527 = vmatprep.subr.mxu0 0.0
    %1528 = vmatpush1.msra.mxu0 0.0
    %1529 = vmatprep.subr.mxu0 0.0
    %1530 = vmatpush1.msra.mxu0 0.0
    %1531 = vmatprep.subr.mxu0 0.0
    %1532 = vmatpush1.msra.mxu0 0.0
    %1533 = vmatprep.subr.mxu0 0.0
    %1534 = vmatpush1.msra.mxu0 0.0
    %1535 = vmatprep.subr.mxu0 0.0
    %1536 = vmatpush1.msra.mxu0 0.0
    %1537 = vmatprep.subr.mxu0 0.0
    %1538 = vmatpush1.msra.mxu0 0.0
    %1539 = vmatprep.mubr.f32.mxu0 0.0
    %v1540 = vand.u32 %v1469, 4294901760
    %v1541 = vsub.f32 %v1469, %v1540
    %v1542 = vand.u32 %v1541, 4294901760
    %v1543 = vsub.f32 %v1541, %v1542
    %v1544 = vand.u32 %v1543, 4294901760
    %1545 = vmatmul.mubr.f32.gmra.mrb[0].mxu0 %v1544
    %v1546 = vpop.f32.mrb[0].mxu0
    %v1547 = vadd.f32 0.0, %v1546
    %v1548 = vpop.f32.mrb[0].mxu0
    %1549 = vdwg.mxu0
    %1550 = vmatprep.subr.mxu0 0.0
    %v1551 = vand.u32 %v1462, 4294901760
    %v1552 = vsub.f32 %v1462, %v1551
    %v1553 = vand.u32 %v1552, 4294901760
    %v1554 = vsub.f32 %v1552, %v1553
    %v1555 = vand.u32 %v1554, 4294901760
    %1556 = vmatpush1.msra.mxu0 %v1555
    %1557 = vmatprep.subr.mxu0 0.0
    %v1558 = vand.u32 %v1463, 4294901760
    %v1559 = vsub.f32 %v1463, %v1558
    %v1560 = vand.u32 %v1559, 4294901760
    %v1561 = vsub.f32 %v1559, %v1560
    %v1562 = vand.u32 %v1561, 4294901760
    %1563 = vmatpush1.msra.mxu0 %v1562
    %1564 = vmatprep.subr.mxu0 0.0
    %v1565 = vand.u32 %v1464, 4294901760
    %v1566 = vsub.f32 %v1464, %v1565
    %v1567 = vand.u32 %v1566, 4294901760
    %v1568 = vsub.f32 %v1566, %v1567
    %v1569 = vand.u32 %v1568, 4294901760
    %1570 = vmatpush1.msra.mxu0 %v1569
    %1571 = vmatprep.subr.mxu0 0.0
    %v1572 = vand.u32 %v1465, 4294901760
    %v1573 = vsub.f32 %v1465, %v1572
    %v1574 = vand.u32 %v1573, 4294901760
    %v1575 = vsub.f32 %v1573, %v1574
    %v1576 = vand.u32 %v1575, 4294901760
    %1577 = vmatpush1.msra.mxu0 %v1576
    %1578 = vmatprep.subr.mxu0 0.0
    %1579 = vmatpush1.msra.mxu0 0.0
    %1580 = vmatprep.subr.mxu0 0.0
    %1581 = vmatpush1.msra.mxu0 0.0
    %1582 = vmatprep.subr.mxu0 0.0
    %1583 = vmatpush1.msra.mxu0 0.0
    %1584 = vmatprep.subr.mxu0 0.0
    %1585 = vmatpush1.msra.mxu0 0.0
    %1586 = vmatprep.subr.mxu0 0.0
    %1587 = vmatpush1.msra.mxu0 0.0
    %1588 = vmatprep.subr.mxu0 0.0
    %1589 = vmatpush1.msra.mxu0 0.0
    %1590 = vmatprep.subr.mxu0 0.0
    %1591 = vmatpush1.msra.mxu0 0.0
    %1592 = vmatprep.subr.mxu0 0.0
    %1593 = vmatpush1.msra.mxu0 0.0
    %1594 = vmatprep.subr.mxu0 0.0
    %1595 = vmatpush1.msra.mxu0 0.0
    %1596 = vmatprep.subr.mxu0 0.0
    %1597 = vmatpush1.msra.mxu0 0.0
    %1598 = vmatprep.subr.mxu0 0.0
    %1599 = vmatpush1.msra.mxu0 0.0
    %1600 = vmatprep.subr.mxu0 0.0
    %1601 = vmatpush1.msra.mxu0 0.0
    %1602 = vmatprep.subr.mxu0 0.0
    %1603 = vmatpush1.msra.mxu0 0.0
    %1604 = vmatprep.subr.mxu0 0.0
    %1605 = vmatpush1.msra.mxu0 0.0
    %1606 = vmatprep.subr.mxu0 0.0
    %1607 = vmatpush1.msra.mxu0 0.0
    %1608 = vmatprep.subr.mxu0 0.0
    %1609 = vmatpush1.msra.mxu0 0.0
    %1610 = vmatprep.subr.mxu0 0.0
    %1611 = vmatpush1.msra.mxu0 0.0
    %1612 = vmatprep.subr.mxu0 0.0
    %1613 = vmatpush1.msra.mxu0 0.0
    %1614 = vmatprep.subr.mxu0 0.0
    %1615 = vmatpush1.msra.mxu0 0.0
    %1616 = vmatprep.subr.mxu0 0.0
    %1617 = vmatpush1.msra.mxu0 0.0
    %1618 = vmatprep.subr.mxu0 0.0
    %1619 = vmatpush1.msra.mxu0 0.0
    %1620 = vmatprep.subr.mxu0 0.0
    %1621 = vmatpush1.msra.mxu0 0.0
    %1622 = vmatprep.subr.mxu0 0.0
    %1623 = vmatpush1.msra.mxu0 0.0
    %1624 = vmatprep.subr.mxu0 0.0
    %1625 = vmatpush1.msra.mxu0 0.0
    %1626 = vmatprep.subr.mxu0 0.0
    %1627 = vmatpush1.msra.mxu0 0.0
    %1628 = vmatprep.subr.mxu0 0.0
    %1629 = vmatpush1.msra.mxu0 0.0
    %1630 = vmatprep.subr.mxu0 0.0
    %1631 = vmatpush1.msra.mxu0 0.0
    %1632 = vmatprep.subr.mxu0 0.0
    %1633 = vmatpush1.msra.mxu0 0.0
    %1634 = vmatprep.mubr.f32.mxu0 0.0
    %v1635 = vand.u32 %v1469, 4294901760
    %1636 = vmatmul.mubr.f32.gmra.mrb[0].mxu0 %v1635
    %v1637 = vpop.f32.mrb[0].mxu0
    %v1638 = vadd.f32 %v1547, %v1637
    %v1639 = vpop.f32.mrb[0].mxu0
    %1640 = vdwg.mxu0
    %1641 = vmatprep.subr.mxu0 0.0
    %v1642 = vand.u32 %v1462, 4294901760
    %v1643 = vsub.f32 %v1462, %v1642
    %1644 = vmatpush1.msra.mxu0 %v1643
    %1645 = vmatprep.subr.mxu0 0.0
    %v1646 = vand.u32 %v1463, 4294901760
    %v1647 = vsub.f32 %v1463, %v1646
    %1648 = vmatpush1.msra.mxu0 %v1647
    %1649 = vmatprep.subr.mxu0 0.0
    %v1650 = vand.u32 %v1464, 4294901760
    %v1651 = vsub.f32 %v1464, %v1650
    %1652 = vmatpush1.msra.mxu0 %v1651
    %1653 = vmatprep.subr.mxu0 0.0
    %v1654 = vand.u32 %v1465, 4294901760
    %v1655 = vsub.f32 %v1465, %v1654
    %1656 = vmatpush1.msra.mxu0 %v1655
    %1657 = vmatprep.subr.mxu0 0.0
    %1658 = vmatpush1.msra.mxu0 0.0
    %1659 = vmatprep.subr.mxu0 0.0
    %1660 = vmatpush1.msra.mxu0 0.0
    %1661 = vmatprep.subr.mxu0 0.0
    %1662 = vmatpush1.msra.mxu0 0.0
    %1663 = vmatprep.subr.mxu0 0.0
    %1664 = vmatpush1.msra.mxu0 0.0
    %1665 = vmatprep.subr.mxu0 0.0
    %1666 = vmatpush1.msra.mxu0 0.0
    %1667 = vmatprep.subr.mxu0 0.0
    %1668 = vmatpush1.msra.mxu0 0.0
    %1669 = vmatprep.subr.mxu0 0.0
    %1670 = vmatpush1.msra.mxu0 0.0
    %1671 = vmatprep.subr.mxu0 0.0
    %1672 = vmatpush1.msra.mxu0 0.0
    %1673 = vmatprep.subr.mxu0 0.0
    %1674 = vmatpush1.msra.mxu0 0.0
    %1675 = vmatprep.subr.mxu0 0.0
    %1676 = vmatpush1.msra.mxu0 0.0
    %1677 = vmatprep.subr.mxu0 0.0
    %1678 = vmatpush1.msra.mxu0 0.0
    %1679 = vmatprep.subr.mxu0 0.0
    %1680 = vmatpush1.msra.mxu0 0.0
    %1681 = vmatprep.subr.mxu0 0.0
    %1682 = vmatpush1.msra.mxu0 0.0
    %1683 = vmatprep.subr.mxu0 0.0
    %1684 = vmatpush1.msra.mxu0 0.0
    %1685 = vmatprep.subr.mxu0 0.0
    %1686 = vmatpush1.msra.mxu0 0.0
    %1687 = vmatprep.subr.mxu0 0.0
    %1688 = vmatpush1.msra.mxu0 0.0
    %1689 = vmatprep.subr.mxu0 0.0
    %1690 = vmatpush1.msra.mxu0 0.0
    %1691 = vmatprep.subr.mxu0 0.0
    %1692 = vmatpush1.msra.mxu0 0.0
    %1693 = vmatprep.subr.mxu0 0.0
    %1694 = vmatpush1.msra.mxu0 0.0
    %1695 = vmatprep.subr.mxu0 0.0
    %1696 = vmatpush1.msra.mxu0 0.0
    %1697 = vmatprep.subr.mxu0 0.0
    %1698 = vmatpush1.msra.mxu0 0.0
    %1699 = vmatprep.subr.mxu0 0.0
    %1700 = vmatpush1.msra.mxu0 0.0
    %1701 = vmatprep.subr.mxu0 0.0
    %1702 = vmatpush1.msra.mxu0 0.0
    %1703 = vmatprep.subr.mxu0 0.0
    %1704 = vmatpush1.msra.mxu0 0.0
    %1705 = vmatprep.subr.mxu0 0.0
    %1706 = vmatpush1.msra.mxu0 0.0
    %1707 = vmatprep.subr.mxu0 0.0
    %1708 = vmatpush1.msra.mxu0 0.0
    %1709 = vmatprep.subr.mxu0 0.0
    %1710 = vmatpush1.msra.mxu0 0.0
    %1711 = vmatprep.subr.mxu0 0.0
    %1712 = vmatpush1.msra.mxu0 0.0
    %1713 = vmatprep.mubr.f32.mxu0 0.0
    %v1714 = vand.u32 %v1469, 4294901760
    %v1715 = vsub.f32 %v1469, %v1714
    %1716 = vmatmul.mubr.f32.gmra.mrb[0].mxu0 %v1715
    %v1717 = vpop.f32.mrb[0].mxu0
    %v1718 = vadd.f32 %v1638, %v1717
    %v1719 = vpop.f32.mrb[0].mxu0
    %1720 = vdwg.mxu0
    %1721 = vmatprep.subr.mxu0 0.0
    %v1722 = vand.u32 %v1462, 4294901760
    %1723 = vmatpush1.msra.mxu0 %v1722
    %1724 = vmatprep.subr.mxu0 0.0
    %v1725 = vand.u32 %v1463, 4294901760
    %1726 = vmatpush1.msra.mxu0 %v1725
    %1727 = vmatprep.subr.mxu0 0.0
    %v1728 = vand.u32 %v1464, 4294901760
    %1729 = vmatpush1.msra.mxu0 %v1728
    %1730 = vmatprep.subr.mxu0 0.0
    %v1731 = vand.u32 %v1465, 4294901760
    %1732 = vmatpush1.msra.mxu0 %v1731
    %1733 = vmatprep.subr.mxu0 0.0
    %1734 = vmatpush1.msra.mxu0 0.0
    %1735 = vmatprep.subr.mxu0 0.0
    %1736 = vmatpush1.msra.mxu0 0.0
    %1737 = vmatprep.subr.mxu0 0.0
    %1738 = vmatpush1.msra.mxu0 0.0
    %1739 = vmatprep.subr.mxu0 0.0
    %1740 = vmatpush1.msra.mxu0 0.0
    %1741 = vmatprep.subr.mxu0 0.0
    %1742 = vmatpush1.msra.mxu0 0.0
    %1743 = vmatprep.subr.mxu0 0.0
    %1744 = vmatpush1.msra.mxu0 0.0
    %1745 = vmatprep.subr.mxu0 0.0
    %1746 = vmatpush1.msra.mxu0 0.0
    %1747 = vmatprep.subr.mxu0 0.0
    %1748 = vmatpush1.msra.mxu0 0.0
    %1749 = vmatprep.subr.mxu0 0.0
    %1750 = vmatpush1.msra.mxu0 0.0
    %1751 = vmatprep.subr.mxu0 0.0
    %1752 = vmatpush1.msra.mxu0 0.0
    %1753 = vmatprep.subr.mxu0 0.0
    %1754 = vmatpush1.msra.mxu0 0.0
    %1755 = vmatprep.subr.mxu0 0.0
    %1756 = vmatpush1.msra.mxu0 0.0
    %1757 = vmatprep.subr.mxu0 0.0
    %1758 = vmatpush1.msra.mxu0 0.0
    %1759 = vmatprep.subr.mxu0 0.0
    %1760 = vmatpush1.msra.mxu0 0.0
    %1761 = vmatprep.subr.mxu0 0.0
    %1762 = vmatpush1.msra.mxu0 0.0
    %1763 = vmatprep.subr.mxu0 0.0
    %1764 = vmatpush1.msra.mxu0 0.0
    %1765 = vmatprep.subr.mxu0 0.0
    %1766 = vmatpush1.msra.mxu0 0.0
    %1767 = vmatprep.subr.mxu0 0.0
    %1768 = vmatpush1.msra.mxu0 0.0
    %1769 = vmatprep.subr.mxu0 0.0
    %1770 = vmatpush1.msra.mxu0 0.0
    %1771 = vmatprep.subr.mxu0 0.0
    %1772 = vmatpush1.msra.mxu0 0.0
    %1773 = vmatprep.subr.mxu0 0.0
    %1774 = vmatpush1.msra.mxu0 0.0
    %1775 = vmatprep.subr.mxu0 0.0
    %1776 = vmatpush1.msra.mxu0 0.0
    %1777 = vmatprep.subr.mxu0 0.0
    %1778 = vmatpush1.msra.mxu0 0.0
    %1779 = vmatprep.subr.mxu0 0.0
    %1780 = vmatpush1.msra.mxu0 0.0
    %1781 = vmatprep.subr.mxu0 0.0
    %1782 = vmatpush1.msra.mxu0 0.0
    %1783 = vmatprep.subr.mxu0 0.0
    %1784 = vmatpush1.msra.mxu0 0.0
    %1785 = vmatprep.subr.mxu0 0.0
    %1786 = vmatpush1.msra.mxu0 0.0
    %1787 = vmatprep.subr.mxu0 0.0
    %1788 = vmatpush1.msra.mxu0 0.0
    %1789 = vmatprep.mubr.f32.mxu0 0.0
    %v1790 = vand.u32 %v1469, 4294901760
    %v1791 = vsub.f32 %v1469, %v1790
    %v1792 = vand.u32 %v1791, 4294901760
    %1793 = vmatmul.mubr.f32.gmra.mrb[0].mxu0 %v1792
    %v1794 = vpop.f32.mrb[0].mxu0
    %v1795 = vadd.f32 %v1718, %v1794
    %v1796 = vpop.f32.mrb[0].mxu0
    %1797 = vdwg.mxu0
    %1798 = vmatprep.subr.mxu0 0.0
    %v1799 = vand.u32 %v1462, 4294901760
    %v1800 = vsub.f32 %v1462, %v1799
    %v1801 = vand.u32 %v1800, 4294901760
    %1802 = vmatpush1.msra.mxu0 %v1801
    %1803 = vmatprep.subr.mxu0 0.0
    %v1804 = vand.u32 %v1463, 4294901760
    %v1805 = vsub.f32 %v1463, %v1804
    %v1806 = vand.u32 %v1805, 4294901760
    %1807 = vmatpush1.msra.mxu0 %v1806
    %1808 = vmatprep.subr.mxu0 0.0
    %v1809 = vand.u32 %v1464, 4294901760
    %v1810 = vsub.f32 %v1464, %v1809
    %v1811 = vand.u32 %v1810, 4294901760
    %1812 = vmatpush1.msra.mxu0 %v1811
    %1813 = vmatprep.subr.mxu0 0.0
    %v1814 = vand.u32 %v1465, 4294901760
    %v1815 = vsub.f32 %v1465, %v1814
    %v1816 = vand.u32 %v1815, 4294901760
    %1817 = vmatpush1.msra.mxu0 %v1816
    %1818 = vmatprep.subr.mxu0 0.0
    %1819 = vmatpush1.msra.mxu0 0.0
    %1820 = vmatprep.subr.mxu0 0.0
    %1821 = vmatpush1.msra.mxu0 0.0
    %1822 = vmatprep.subr.mxu0 0.0
    %1823 = vmatpush1.msra.mxu0 0.0
    %1824 = vmatprep.subr.mxu0 0.0
    %1825 = vmatpush1.msra.mxu0 0.0
    %1826 = vmatprep.subr.mxu0 0.0
    %1827 = vmatpush1.msra.mxu0 0.0
    %1828 = vmatprep.subr.mxu0 0.0
    %1829 = vmatpush1.msra.mxu0 0.0
    %1830 = vmatprep.subr.mxu0 0.0
    %1831 = vmatpush1.msra.mxu0 0.0
    %1832 = vmatprep.subr.mxu0 0.0
    %1833 = vmatpush1.msra.mxu0 0.0
    %1834 = vmatprep.subr.mxu0 0.0
    %1835 = vmatpush1.msra.mxu0 0.0
    %1836 = vmatprep.subr.mxu0 0.0
    %1837 = vmatpush1.msra.mxu0 0.0
    %1838 = vmatprep.subr.mxu0 0.0
    %1839 = vmatpush1.msra.mxu0 0.0
    %1840 = vmatprep.subr.mxu0 0.0
    %1841 = vmatpush1.msra.mxu0 0.0
    %1842 = vmatprep.subr.mxu0 0.0
    %1843 = vmatpush1.msra.mxu0 0.0
    %1844 = vmatprep.subr.mxu0 0.0
    %1845 = vmatpush1.msra.mxu0 0.0
    %1846 = vmatprep.subr.mxu0 0.0
    %1847 = vmatpush1.msra.mxu0 0.0
    %1848 = vmatprep.subr.mxu0 0.0
    %1849 = vmatpush1.msra.mxu0 0.0
    %1850 = vmatprep.subr.mxu0 0.0
    %1851 = vmatpush1.msra.mxu0 0.0
    %1852 = vmatprep.subr.mxu0 0.0
    %1853 = vmatpush1.msra.mxu0 0.0
    %1854 = vmatprep.subr.mxu0 0.0
    %1855 = vmatpush1.msra.mxu0 0.0
    %1856 = vmatprep.subr.mxu0 0.0
    %1857 = vmatpush1.msra.mxu0 0.0
    %1858 = vmatprep.subr.mxu0 0.0
    %1859 = vmatpush1.msra.mxu0 0.0
    %1860 = vmatprep.subr.mxu0 0.0
    %1861 = vmatpush1.msra.mxu0 0.0
    %1862 = vmatprep.subr.mxu0 0.0
    %1863 = vmatpush1.msra.mxu0 0.0
    %1864 = vmatprep.subr.mxu0 0.0
    %1865 = vmatpush1.msra.mxu0 0.0
    %1866 = vmatprep.subr.mxu0 0.0
    %1867 = vmatpush1.msra.mxu0 0.0
    %1868 = vmatprep.subr.mxu0 0.0
    %1869 = vmatpush1.msra.mxu0 0.0
    %1870 = vmatprep.subr.mxu0 0.0
    %1871 = vmatpush1.msra.mxu0 0.0
    %1872 = vmatprep.subr.mxu0 0.0
    %1873 = vmatpush1.msra.mxu0 0.0
    %1874 = vmatprep.mubr.f32.mxu0 0.0
    %v1875 = vand.u32 %v1469, 4294901760
    %1876 = vmatmul.mubr.f32.gmra.mrb[0].mxu0 %v1875
    %v1877 = vpop.f32.mrb[0].mxu0
    %v1878 = vadd.f32 %v1795, %v1877
    %v1879 = vpop.f32.mrb[0].mxu0
    %1880 = vdwg.mxu0
    %1881 = vmatprep.subr.mxu0 0.0
    %v1882 = vand.u32 %v1462, 4294901760
    %1883 = vmatpush1.msra.mxu0 %v1882
    %1884 = vmatprep.subr.mxu0 0.0
    %v1885 = vand.u32 %v1463, 4294901760
    %1886 = vmatpush1.msra.mxu0 %v1885
    %1887 = vmatprep.subr.mxu0 0.0
    %v1888 = vand.u32 %v1464, 4294901760
    %1889 = vmatpush1.msra.mxu0 %v1888
    %1890 = vmatprep.subr.mxu0 0.0
    %v1891 = vand.u32 %v1465, 4294901760
    %1892 = vmatpush1.msra.mxu0 %v1891
    %1893 = vmatprep.subr.mxu0 0.0
    %1894 = vmatpush1.msra.mxu0 0.0
    %1895 = vmatprep.subr.mxu0 0.0
    %1896 = vmatpush1.msra.mxu0 0.0
    %1897 = vmatprep.subr.mxu0 0.0
    %1898 = vmatpush1.msra.mxu0 0.0
    %1899 = vmatprep.subr.mxu0 0.0
    %1900 = vmatpush1.msra.mxu0 0.0
    %1901 = vmatprep.subr.mxu0 0.0
    %1902 = vmatpush1.msra.mxu0 0.0
    %1903 = vmatprep.subr.mxu0 0.0
    %1904 = vmatpush1.msra.mxu0 0.0
    %1905 = vmatprep.subr.mxu0 0.0
    %1906 = vmatpush1.msra.mxu0 0.0
    %1907 = vmatprep.subr.mxu0 0.0
    %1908 = vmatpush1.msra.mxu0 0.0
    %1909 = vmatprep.subr.mxu0 0.0
    %1910 = vmatpush1.msra.mxu0 0.0
    %1911 = vmatprep.subr.mxu0 0.0
    %1912 = vmatpush1.msra.mxu0 0.0
    %1913 = vmatprep.subr.mxu0 0.0
    %1914 = vmatpush1.msra.mxu0 0.0
    %1915 = vmatprep.subr.mxu0 0.0
    %1916 = vmatpush1.msra.mxu0 0.0
    %1917 = vmatprep.subr.mxu0 0.0
    %1918 = vmatpush1.msra.mxu0 0.0
    %1919 = vmatprep.subr.mxu0 0.0
    %1920 = vmatpush1.msra.mxu0 0.0
    %1921 = vmatprep.subr.mxu0 0.0
    %1922 = vmatpush1.msra.mxu0 0.0
    %1923 = vmatprep.subr.mxu0 0.0
    %1924 = vmatpush1.msra.mxu0 0.0
    %1925 = vmatprep.subr.mxu0 0.0
    %1926 = vmatpush1.msra.mxu0 0.0
    %1927 = vmatprep.subr.mxu0 0.0
    %1928 = vmatpush1.msra.mxu0 0.0
    %1929 = vmatprep.subr.mxu0 0.0
    %1930 = vmatpush1.msra.mxu0 0.0
    %1931 = vmatprep.subr.mxu0 0.0
    %1932 = vmatpush1.msra.mxu0 0.0
    %1933 = vmatprep.subr.mxu0 0.0
    %1934 = vmatpush1.msra.mxu0 0.0
    %1935 = vmatprep.subr.mxu0 0.0
    %1936 = vmatpush1.msra.mxu0 0.0
    %1937 = vmatprep.subr.mxu0 0.0
    %1938 = vmatpush1.msra.mxu0 0.0
    %1939 = vmatprep.subr.mxu0 0.0
    %1940 = vmatpush1.msra.mxu0 0.0
    %1941 = vmatprep.subr.mxu0 0.0
    %1942 = vmatpush1.msra.mxu0 0.0
    %1943 = vmatprep.subr.mxu0 0.0
    %1944 = vmatpush1.msra.mxu0 0.0
    %1945 = vmatprep.subr.mxu0 0.0
    %1946 = vmatpush1.msra.mxu0 0.0
    %1947 = vmatprep.subr.mxu0 0.0
    %1948 = vmatpush1.msra.mxu0 0.0
    %1949 = vmatprep.mubr.f32.mxu0 0.0
    %v1950 = vand.u32 %v1469, 4294901760
    %1951 = vmatmul.mubr.f32.gmra.mrb[0].mxu0 %v1950
    %v1952 = vpop.f32.mrb[0].mxu0
    %v1953 = vadd.f32 %v1878, %v1952
    %v1954 = vpop.f32.mrb[0].mxu0
    %1955 = vdwg.mxu0
    %1957 = vset.pattern.permute.xlu0 0
    %1958 = vperm.xlu0 %1957, %v1467
    %v1959 = vpop.permute.xlu0 %1958
    %v1961 = vadd.f32 %v1953, %v1959
    %vm1962 = vcmask 57344
    %1963 = vst.msk [vmem:[#allocation7] sm:$0x1] %vm1962, %v1961
    // Predicated region
    $region18: #{tpu_custom_call.1} parent=1 // pred_check
      _
    $region19: #{tpu_custom_call.1} parent=1 // pred_check_branch
      %1965 = sbr.rel (0) target = $region21
    $region20: #{tpu_custom_call.1} parent=1 // pred_region
      %s1967 = ssub.s32 16, 16
      %1968 = vsyncadd [#allocation4], %s1967
      %s1970 = sshll.u32 [#allocation7], 4
      %s1971 = int_to_ptr.vmem [resolvable:$true] %s1970
      %1973 = dma.vmem_to_hbm [thread:$0]  %s1971, 16, %s2, [#allocation4]
    $region21: #{tpu_custom_call.1} parent=1 // pred_fallthru
      _
    // Predicated region
    $region22: #{tpu_custom_call.1} parent=1 // pred_check
      _
    $region23: #{tpu_custom_call.1} parent=1 // pred_check_branch
      %1975 = sbr.rel (0) target = $region25
    $region24: #{tpu_custom_call.1} parent=1 // pred_region
      %1976 = dma.done [#allocation4], 16
    $region25: #{tpu_custom_call.1} parent=1 // pred_fallthru
      _
    %1977 = vsyncpa [#allocation3], 1
    %1978 = vsyncpa [#allocation6], 1
    %1979 = vsyncpa [#allocation4], 1

</llo_original>
